<compile_context>
chip_gen: v7x
topology: tpu7x:2x2x1
jax: 0.10.0
libtpu: 0.0.40
codegen_flags: <defaults>
</compile_context>

<pallas_src>
import functools

import jax
import jax.numpy as jnp
from jax.experimental import pallas as pl
from jax.experimental.pallas import tpu as pltpu


def _round_up(x, m):
    return (x + m - 1) // m * m


def _vmem_capacity_bytes():
    """Generation-aware VMEM capacity (64 MiB on v7x, 128 MiB on v5e/v6e)."""
    try:
        info = pltpu.get_tpu_info()
        cap = getattr(info, "vmem_capacity_bytes", None)
        if cap:
            return int(cap)
    except Exception:
        pass
    return 64 * 1024 * 1024          # conservative fallback (v7x-sized)


def _pick_batch_block(n_batch, per_sample_bytes, budget_bytes, other_parallel=1):
    """Largest divisor of N whose block fits the VMEM budget, while keeping at
    least 2 total grid steps when possible so both v7x TensorCores get work.

    Note: odd / prime batch sizes fall back to Nb == 1 (correct, just smaller
    blocks)."""
    divisors = [d for d in range(1, n_batch + 1) if n_batch % d == 0]
    nb = 1
    for d in divisors:
        if d * per_sample_bytes <= budget_bytes:
            nb = d
    while nb > 1 and (n_batch // nb) * other_parallel < min(2, n_batch):
        nb = max(d for d in divisors if d < nb)
    return nb


def _temporal_conv_bn_kernel(x_ref, w_ref, shift_ref, o_ref, xpad_ref, slab_ref, *,
                             K, stride, dilation, pad, lpad, T, T_out, V, C_in,
                             Nb, vc, n_chunks, tile_cout):
    """One (Nb, V, T, C_in) x (K*C_in, tile_cout) block of TemporalConv + BN.

    x_ref:     (Nb, V, T, C_in)            channel-last activation block
    w_ref:     (K*C_in, tile_cout)         BN-scale-folded im2col weight tile
    shift_ref: (1, tile_cout)              folded bias/shift (f32)
    o_ref:     (Nb, V*T_out, tile_cout)    lane+sublane-dense output slab
    xpad_ref:  (Nb, V, lpad+T+pad, C_in)   VMEM scratch for in-kernel zero pad
    slab_ref:  (Nb*vc*T_out, K*C_in)       VMEM scratch for the im2col chunk
    """
    # ---- in-kernel temporal zero padding (no HBM jnp.pad round trip) ------
    # Re-zeroed every step: the scratch is per-core and the "parallel" grid
    # split means the other core never sees program_id == 0, so a pl.when
    # guard would be unsafe. The strips are tiny.
    if pad > 0:
        xpad_ref[:, :, 0:lpad, :] = jnp.zeros((Nb, V, lpad, C_in),
                                              dtype=xpad_ref.dtype)
        xpad_ref[:, :, lpad + T:lpad + T + pad, :] = jnp.zeros(
            (Nb, V, pad, C_in), dtype=xpad_ref.dtype)
    # lpad is a multiple of 8 -> sublane-aligned (unmasked) store of the block.
    xpad_ref[:, :, lpad:lpad + T, :] = x_ref[...]

    chunk_rows = Nb * vc * T_out
    shift = shift_ref[...]                       # (1, tile_cout) f32, hoisted

    def emit_chunk(v0, r0):
        # Build the (chunk_rows, K*C_in) im2col slab with K direct stores at
        # static lane offsets (no lane-axis concatenate / relayout).
        for k in range(K):                       # K is small & static
            start = lpad - pad + k * dilation
            if stride == 1:
                xs = xpad_ref[:, pl.ds(v0, vc), pl.ds(start, T_out), :]
            else:
                xs = xpad_ref[:, pl.ds(v0, vc),
                              pl.ds(start, T_out, stride=stride), :]
            # (Nb, vc, T_out, C_in) -> (chunk_rows, C_in): leading-dim collapse.
            slab_ref[:, k * C_in:(k + 1) * C_in] = xs.reshape(chunk_rows, C_in)
        # One MXU matmul per chunk (f32 accumulate) + folded-BN broadcast add.
        acc = jnp.dot(slab_ref[...], w_ref[...],
                      preferred_element_type=jnp.float32)
        y = (acc + shift).astype(o_ref.dtype)
        # Lane- AND sublane-dense store into the flat output slab.
        o_ref[:, pl.ds(r0, vc * T_out), :] = y.reshape(Nb, vc * T_out, tile_cout)

    if n_chunks == 1:
        emit_chunk(0, 0)
    else:
        r0_step = vc * T_out

        def chunk_body(ci, carry):
            v0 = ci * vc
            r0 = pl.multiple_of(ci * r0_step, r0_step)
            emit_chunk(v0, r0)
            return carry

        jax.lax.fori_loop(0, n_chunks, chunk_body, 0, unroll=n_chunks <= 8)


def temporal_conv_bn_nvtc(x, w, b, gamma, beta, running_mean, running_var, *,
                          kernel_size=5, stride=1, dilation=1, eps=1e-5,
                          compute_dtype=jnp.bfloat16, out_dtype=None,
                          keep_cout_pad=False):
    """Channel-last TemporalConv + eval-mode BN.

    x: (N, V, T, C_in) -> (N, V, T_out, C_out)   [C_out_pad if keep_cout_pad]
    Prefer keep_cout_pad=True + bf16 out_dtype when chaining kernels so the
    next layer's folded weight absorbs the zero lanes (no non-lane-aligned
    slice between layers)."""
    N, V, T, C_in = x.shape
    C_out = w.shape[0]
    K = kernel_size
    pad = (K + (K - 1) * (dilation - 1) - 1) // 2
    lpad = _round_up(pad, 8) if pad > 0 else 0         # sublane-aligned x copy
    T_pad_alloc = lpad + T + pad
    T_out = (T + 2 * pad - dilation * (K - 1) - 1) // stride + 1
    C_out_pad = _round_up(C_out, 128)
    out_dtype = compute_dtype if out_dtype is None else out_dtype

    # ---- fold eval-mode BN + conv bias into the weight / a single shift ----
    scale = (gamma / jnp.sqrt(running_var + eps)).astype(jnp.float32)
    shift = (beta + (b - running_mean) * scale).astype(jnp.float32)
    w_t = jnp.transpose(w[..., 0], (2, 1, 0)).astype(jnp.float32)  # (K, C_in, C_out)
    w_folded = (w_t * scale[None, None, :]).reshape(K * C_in, C_out)
    w_folded = jnp.pad(w_folded, ((0, 0), (0, C_out_pad - C_out)))
    shift_p = jnp.pad(shift, (0, C_out_pad - C_out)).reshape(1, C_out_pad)

    x_k = x.astype(compute_dtype)
    w_k = w_folded.astype(compute_dtype)

    # ---- tiling: batch blocks x C_out tiles, generation-aware VMEM --------
    vmem_cap = _vmem_capacity_bytes()
    if vmem_cap <= 64 * 1024 * 1024:              # v7x-sized parts (64 MiB)
        batch_budget = 6 * 1024 * 1024
        vmem_cap_limit = 36 * 1024 * 1024
    else:                                         # v5e / v6e (128 MiB VMEM)
        batch_budget = 14 * 1024 * 1024
        vmem_cap_limit = 64 * 1024 * 1024

    tile_cout = 256 if C_out_pad % 256 == 0 else 128   # fill the 256-wide MXU
    n_ct = C_out_pad // tile_cout

    itm = jnp.dtype(compute_dtype).itemsize
    otm = jnp.dtype(out_dtype).itemsize
    per_sample = (2 * V * T * C_in * itm               # double-buffered input
                  + V * T_pad_alloc * C_in * itm       # in-kernel pad scratch
                  + 2 * V * T_out * tile_cout * otm)   # double-buffered output
    Nb = _pick_batch_block(N, per_sample, batch_budget, other_parallel=n_ct)
    if (N // Nb) * n_ct < 2 and C_out_pad // 128 >= 2:
        tile_cout = 128                    # split C_out so both v7x TCs get work
        n_ct = C_out_pad // tile_cout

    # Row chunking over joints (vc divides V): keep chunk rows ~<= 512.
    target_rows = 512
    vc = 1
    for d in range(1, V + 1):
        if V % d == 0 and Nb * d * T_out <= max(target_rows, Nb * T_out):
            vc = d
    chunk_rows = Nb * vc * T_out
    n_chunks = V // vc

    est = (Nb * per_sample
           + 2 * K * C_in * tile_cout * itm + 2 * tile_cout * 4   # w/shift bufs
           + chunk_rows * K * C_in * itm                          # slab scratch
           + 2 * chunk_rows * tile_cout * 4)                      # f32 acc + epilogue
    vmem_limit = int(min(vmem_cap_limit, max(16 * 1024 * 1024, 2 * est)))

    kernel = functools.partial(
        _temporal_conv_bn_kernel, K=K, stride=stride, dilation=dilation,
        pad=pad, lpad=lpad, T=T, T_out=T_out, V=V, C_in=C_in,
        Nb=Nb, vc=vc, n_chunks=n_chunks, tile_cout=tile_cout)

    out = pl.pallas_call(
        kernel,
        out_shape=jax.ShapeDtypeStruct((N, V * T_out, C_out_pad), out_dtype),
        grid_spec=pltpu.PrefetchScalarGridSpec(
            num_scalar_prefetch=0,
            grid=(N // Nb, n_ct),
            in_specs=[
                pl.BlockSpec((Nb, V, T, C_in), lambda n, j: (n, 0, 0, 0)),
                pl.BlockSpec((K * C_in, tile_cout), lambda n, j: (0, j)),
                pl.BlockSpec((1, tile_cout), lambda n, j: (0, j)),
            ],
            out_specs=pl.BlockSpec((Nb, V * T_out, tile_cout),
                                   lambda n, j: (n, 0, j)),
            scratch_shapes=[
                pltpu.VMEM((Nb, V, T_pad_alloc, C_in), compute_dtype),
                pltpu.VMEM((chunk_rows, K * C_in), compute_dtype),
            ],
        ),
        compiler_params=pltpu.CompilerParams(
            dimension_semantics=("parallel", "parallel"),
            vmem_limit_bytes=vmem_limit),
    )(x_k, w_k, shift_p)

    out = out.reshape(N, V, T_out, C_out_pad)       # free reshape outside kernel
    if keep_cout_pad:
        return out
    return out[..., :C_out]   # non-lane-aligned slice; avoid between layers


def temporal_conv_bn_nchw(x_nchw, *params, **kwargs):
    """PyTorch-interface wrapper: NCHW in/out, f32 out, C_out sliced.
    Inside a network prefer the channel-last entry point (transpose once at
    the boundary, keep bf16 + padded C_out between layers)."""
    kwargs.setdefault("out_dtype", x_nchw.dtype)
    kwargs.setdefault("keep_cout_pad", False)
    x_nvtc = jnp.transpose(x_nchw, (0, 3, 2, 1))          # (N, V, T, C_in)
    y = temporal_conv_bn_nvtc(x_nvtc, *params, **kwargs)  # (N, V, T_out, C_out)
    return jnp.transpose(y, (0, 3, 2, 1))                 # (N, C_out, T_out, V)


def temporal_conv_reference(x, w, b, gamma, beta, running_mean, running_var,
                            *, stride=1, dilation=1, pad=2, eps=1e-5):
    """Pure-JAX f32 reference (conv_general_dilated + eval-mode BN)."""
    y = jax.lax.conv_general_dilated(
        x, w, window_strides=(stride, 1),
        padding=((pad, pad), (0, 0)),
        rhs_dilation=(dilation, 1),
        dimension_numbers=("NCHW", "OIHW", "NCHW"))
    y = y + b[None, :, None, None]
    s = gamma / jnp.sqrt(running_var + eps)
    return ((y - running_mean[None, :, None, None]) * s[None, :, None, None]
            + beta[None, :, None, None])


if __name__ == "__main__":
    # Small shapes consistent with the module: x is (N, C_in, T, V).
    N, C_in, C_out, T = 2, 4, 8, 16
    K = 5

    key = jax.random.PRNGKey(0)
    kx, kw, kb, kg, kbt, km, kv = jax.random.split(key, 7)

    # Conv2d params: weight (C_out, C_in, K, 1), bias (C_out,)
    w = jax.random.normal(kw, (C_out, C_in, K, 1), jnp.float32) * 0.1
    b = jax.random.normal(kb, (C_out,), jnp.float32) * 0.1
    # BatchNorm2d params (eval-mode / running statistics)
    gamma = 1.0 + 0.1 * jax.random.normal(kg, (C_out,), jnp.float32)
    beta = 0.1 * jax.random.normal(kbt, (C_out,), jnp.float32)
    running_mean = 0.1 * jax.random.normal(km, (C_out,), jnp.float32)
    running_var = 1.0 + 0.1 * jax.nn.softplus(
        jax.random.normal(kv, (C_out,), jnp.float32))

    # (V, stride, dilation, compute dtype, atol/rtol vs. f32 reference)
    configs = [
        (16, 1, 1, jnp.bfloat16, 5e-2),  # default bf16 MXU path
        (16, 1, 2, jnp.float32, 5e-2),   # dilated taps + f32 compute path
        (16, 2, 1, jnp.bfloat16, 5e-2),  # strided (downsampling) path
        (40, 1, 1, jnp.bfloat16, 5e-2),  # larger V -> multi-chunk fori_loop path
    ]
    for idx, (V, stride, dilation, cdt, tol) in enumerate(configs):
        kxi = jax.random.fold_in(kx, idx)
        x = jax.random.normal(kxi, (N, C_in, T, V), jnp.float32)
        pad = (K + (K - 1) * (dilation - 1) - 1) // 2

        out = temporal_conv_bn_nchw(
            x, w, b, gamma, beta, running_mean, running_var,
            kernel_size=K, stride=stride, dilation=dilation,
            compute_dtype=cdt)
        out = jax.block_until_ready(out)

        ref = temporal_conv_reference(
            x, w, b, gamma, beta, running_mean, running_var,
            stride=stride, dilation=dilation, pad=pad)

        assert out.shape == ref.shape, (out.shape, ref.shape)
        max_err = float(jnp.max(jnp.abs(out - ref)))
        assert bool(jnp.allclose(out, ref, atol=tol, rtol=tol)), (
            V, stride, dilation, max_err)
        rel_l2 = float(jnp.linalg.norm(out - ref) / jnp.linalg.norm(ref))
        assert rel_l2 < 2e-2, (V, stride, dilation, rel_l2)

    # Chaining-friendly path: channel-last in/out, bf16 output, padded C_out.
    V = 16
    x16 = jax.random.normal(jax.random.fold_in(kx, 100), (N, C_in, T, V),
                            jnp.float32)
    x_nvtc = jnp.transpose(x16, (0, 3, 2, 1)).astype(jnp.bfloat16)
    y_pad = temporal_conv_bn_nvtc(
        x_nvtc, w, b, gamma, beta, running_mean, running_var,
        kernel_size=K, stride=1, dilation=1, keep_cout_pad=True)
    y_pad = jax.block_until_ready(y_pad)
    assert y_pad.shape == (N, V, T, 128), y_pad.shape
    ref0 = temporal_conv_reference(
        x16, w, b, gamma, beta, running_mean, running_var,
        stride=1, dilation=1, pad=(K - 1) // 2)
    y_cmp = jnp.transpose(y_pad[..., :C_out].astype(jnp.float32), (0, 3, 2, 1))
    assert bool(jnp.allclose(y_cmp, ref0, atol=7e-2, rtol=7e-2))
    # Padded lanes carry zero weight columns and zero shift -> exactly zero.
    assert float(jnp.max(jnp.abs(y_pad[..., C_out:].astype(jnp.float32)))) == 0.0

    print("KERNEL_OK")
</pallas_src>

<mosaic_0001>
module attributes {stable_mosaic.version = 11 : i64} {
  func.func @_temporal_conv_bn_kernel(%arg0: i32, %arg1: i32, %arg2: memref<1x16x16x4xbf16, #tpu.memory_space<vmem>>, %arg3: memref<20x128xbf16, #tpu.memory_space<vmem>>, %arg4: memref<1x128xf32, #tpu.memory_space<vmem>>, %arg5: memref<1x256x128xf32, #tpu.memory_space<vmem>>, %arg6: memref<1x16x26x4xbf16, #tpu.memory_space<vmem>>, %arg7: memref<256x20xbf16, #tpu.memory_space<vmem>>) attributes {dimension_semantics = [#tpu.dimension_semantics<parallel>, #tpu.dimension_semantics<parallel>], iteration_bounds = array<i64: 2, 1>, scalar_prefetch = 0 : i64, scratch_operands = 2 : i64, tpu.core_type = #tpu.core_type<tc>, window_params = [{transform_indices = @transform_0, window_bounds = array<i64: 1, 16, 16, 4>}, {transform_indices = @transform_1, window_bounds = array<i64: 20, 128>}, {transform_indices = @transform_2, window_bounds = array<i64: 1, 128>}, {transform_indices = @transform_3, window_bounds = array<i64: 1, 256, 128>}]} {
    %cst = arith.constant 0.000000e+00 : bf16
    %0 = vector.broadcast %cst : bf16 to vector<1x16x8x4xbf16>
    %c0 = arith.constant 0 : index
    %c0_0 = arith.constant 0 : index
    %c0_1 = arith.constant 0 : index
    %c0_2 = arith.constant 0 : index
    %1 = vector.load %arg6[%c0, %c0_0, %c0_1, %c0_2] : memref<1x16x26x4xbf16, #tpu.memory_space<vmem>>, vector<1x16x8x4xbf16>
    tpu.vector_store %arg6[%c0, %c0_0, %c0_1, %c0_2], %0 {strides = array<i32>} : memref<1x16x26x4xbf16, #tpu.memory_space<vmem>>, vector<1x16x8x4xbf16>,
    %cst_3 = arith.constant 0.000000e+00 : bf16
    %2 = vector.broadcast %cst_3 : bf16 to vector<1x16x2x4xbf16>
    %c0_4 = arith.constant 0 : index
    %c0_5 = arith.constant 0 : index
    %c24 = arith.constant 24 : index
    %c0_6 = arith.constant 0 : index
    %3 = vector.load %arg6[%c0_4, %c0_5, %c24, %c0_6] : memref<1x16x26x4xbf16, #tpu.memory_space<vmem>>, vector<1x16x2x4xbf16>
    tpu.vector_store %arg6[%c0_4, %c0_5, %c24, %c0_6], %2 {strides = array<i32>} : memref<1x16x26x4xbf16, #tpu.memory_space<vmem>>, vector<1x16x2x4xbf16>,
    %c0_7 = arith.constant 0 : index
    %c0_8 = arith.constant 0 : index
    %c0_9 = arith.constant 0 : index
    %c0_10 = arith.constant 0 : index
    %4 = vector.load %arg2[%c0_7, %c0_8, %c0_9, %c0_10] : memref<1x16x16x4xbf16, #tpu.memory_space<vmem>>, vector<1x16x16x4xbf16>
    %c0_11 = arith.constant 0 : index
    %c0_12 = arith.constant 0 : index
    %c8 = arith.constant 8 : index
    %c0_13 = arith.constant 0 : index
    %5 = vector.load %arg6[%c0_11, %c0_12, %c8, %c0_13] : memref<1x16x26x4xbf16, #tpu.memory_space<vmem>>, vector<1x16x16x4xbf16>
    tpu.vector_store %arg6[%c0_11, %c0_12, %c8, %c0_13], %4 {strides = array<i32>} : memref<1x16x26x4xbf16, #tpu.memory_space<vmem>>, vector<1x16x16x4xbf16>,
    %c0_14 = arith.constant 0 : index
    %c0_15 = arith.constant 0 : index
    %6 = vector.load %arg4[%c0_14, %c0_15] : memref<1x128xf32, #tpu.memory_space<vmem>>, vector<1x128xf32>
    %c0_16 = arith.constant 0 : index
    %c0_17 = arith.constant 0 : index
    %c6 = arith.constant 6 : index
    %c0_18 = arith.constant 0 : index
    %7 = vector.load %arg6[%c0_16, %c0_17, %c6, %c0_18] : memref<1x16x26x4xbf16, #tpu.memory_space<vmem>>, vector<1x16x16x4xbf16>
    %8 = vector.shape_cast %7 : vector<1x16x16x4xbf16> to vector<256x4xbf16>
    %c0_19 = arith.constant 0 : index
    %c0_20 = arith.constant 0 : index
    %9 = vector.load %arg7[%c0_19, %c0_20] : memref<256x20xbf16, #tpu.memory_space<vmem>>, vector<256x4xbf16>
    tpu.vector_store %arg7[%c0_19, %c0_20], %8 {strides = array<i32>} : memref<256x20xbf16, #tpu.memory_space<vmem>>, vector<256x4xbf16>,
    %c0_21 = arith.constant 0 : index
    %c0_22 = arith.constant 0 : index
    %c7 = arith.constant 7 : index
    %c0_23 = arith.constant 0 : index
    %10 = vector.load %arg6[%c0_21, %c0_22, %c7, %c0_23] : memref<1x16x26x4xbf16, #tpu.memory_space<vmem>>, vector<1x16x16x4xbf16>
    %11 = vector.shape_cast %10 : vector<1x16x16x4xbf16> to vector<256x4xbf16>
    %c0_24 = arith.constant 0 : index
    %c4 = arith.constant 4 : index
    %12 = vector.load %arg7[%c0_24, %c4] : memref<256x20xbf16, #tpu.memory_space<vmem>>, vector<256x4xbf16>
    tpu.vector_store %arg7[%c0_24, %c4], %11 {strides = array<i32>} : memref<256x20xbf16, #tpu.memory_space<vmem>>, vector<256x4xbf16>,
    %c0_25 = arith.constant 0 : index
    %c0_26 = arith.constant 0 : index
    %c8_27 = arith.constant 8 : index
    %c0_28 = arith.constant 0 : index
    %13 = vector.load %arg6[%c0_25, %c0_26, %c8_27, %c0_28] : memref<1x16x26x4xbf16, #tpu.memory_space<vmem>>, vector<1x16x16x4xbf16>
    %14 = vector.shape_cast %13 : vector<1x16x16x4xbf16> to vector<256x4xbf16>
    %c0_29 = arith.constant 0 : index
    %c8_30 = arith.constant 8 : index
    %15 = vector.load %arg7[%c0_29, %c8_30] : memref<256x20xbf16, #tpu.memory_space<vmem>>, vector<256x4xbf16>
    tpu.vector_store %arg7[%c0_29, %c8_30], %14 {strides = array<i32>} : memref<256x20xbf16, #tpu.memory_space<vmem>>, vector<256x4xbf16>,
    %c0_31 = arith.constant 0 : index
    %c0_32 = arith.constant 0 : index
    %c9 = arith.constant 9 : index
    %c0_33 = arith.constant 0 : index
    %16 = vector.load %arg6[%c0_31, %c0_32, %c9, %c0_33] : memref<1x16x26x4xbf16, #tpu.memory_space<vmem>>, vector<1x16x16x4xbf16>
    %17 = vector.shape_cast %16 : vector<1x16x16x4xbf16> to vector<256x4xbf16>
    %c0_34 = arith.constant 0 : index
    %c12 = arith.constant 12 : index
    %18 = vector.load %arg7[%c0_34, %c12] : memref<256x20xbf16, #tpu.memory_space<vmem>>, vector<256x4xbf16>
    tpu.vector_store %arg7[%c0_34, %c12], %17 {strides = array<i32>} : memref<256x20xbf16, #tpu.memory_space<vmem>>, vector<256x4xbf16>,
    %c0_35 = arith.constant 0 : index
    %c0_36 = arith.constant 0 : index
    %c10 = arith.constant 10 : index
    %c0_37 = arith.constant 0 : index
    %19 = vector.load %arg6[%c0_35, %c0_36, %c10, %c0_37] : memref<1x16x26x4xbf16, #tpu.memory_space<vmem>>, vector<1x16x16x4xbf16>
    %20 = vector.shape_cast %19 : vector<1x16x16x4xbf16> to vector<256x4xbf16>
    %c0_38 = arith.constant 0 : index
    %c16 = arith.constant 16 : index
    %21 = vector.load %arg7[%c0_38, %c16] : memref<256x20xbf16, #tpu.memory_space<vmem>>, vector<256x4xbf16>
    tpu.vector_store %arg7[%c0_38, %c16], %20 {strides = array<i32>} : memref<256x20xbf16, #tpu.memory_space<vmem>>, vector<256x4xbf16>,
    %c0_39 = arith.constant 0 : index
    %c0_40 = arith.constant 0 : index
    %22 = vector.load %arg7[%c0_39, %c0_40] : memref<256x20xbf16, #tpu.memory_space<vmem>>, vector<256x20xbf16>
    %c0_41 = arith.constant 0 : index
    %c0_42 = arith.constant 0 : index
    %23 = vector.load %arg3[%c0_41, %c0_42] : memref<20x128xbf16, #tpu.memory_space<vmem>>, vector<20x128xbf16>
    %cst_43 = arith.constant dense<0.000000e+00> : vector<256x128xf32>
    %24 = tpu.matmul %22, %23, %cst_43 {dimension_numbers = #tpu.dot_dimension_numbers<[1], [0], [0], [1], [0, 0, 1, 1], [], []>} : vector<256x20xbf16>, vector<20x128xbf16>, vector<256x128xf32> -> vector<256x128xf32>
    %25 = vector.broadcast %6 : vector<1x128xf32> to vector<256x128xf32>
    %26 = arith.addf %24, %25 : vector<256x128xf32>
    %27 = vector.shape_cast %26 : vector<256x128xf32> to vector<1x256x128xf32>
    %c0_44 = arith.constant 0 : index
    %c0_45 = arith.constant 0 : index
    %c0_46 = arith.constant 0 : index
    %28 = vector.load %arg5[%c0_44, %c0_45, %c0_46] : memref<1x256x128xf32, #tpu.memory_space<vmem>>, vector<1x256x128xf32>
    tpu.vector_store %arg5[%c0_44, %c0_45, %c0_46], %27 {strides = array<i32>} : memref<1x256x128xf32, #tpu.memory_space<vmem>>, vector<1x256x128xf32>,
    return
  }
  func.func @transform_0(%arg0: i32, %arg1: i32) -> (i32, i32, i32, i32) {
    %c0_i32 = arith.constant 0 : i32
    %c0_i32_0 = arith.constant 0 : i32
    %c0_i32_1 = arith.constant 0 : i32
    %c0_i32_2 = arith.constant 0 : i32
    return %arg0, %c0_i32, %c0_i32_0, %c0_i32_1 : i32, i32, i32, i32
  }
  func.func @transform_1(%arg0: i32, %arg1: i32) -> (i32, i32) {
    %c0_i32 = arith.constant 0 : i32
    %c0_i32_0 = arith.constant 0 : i32
    return %c0_i32, %arg1 : i32, i32
  }
  func.func @transform_2(%arg0: i32, %arg1: i32) -> (i32, i32) {
    %c0_i32 = arith.constant 0 : i32
    %c0_i32_0 = arith.constant 0 : i32
    return %c0_i32, %arg1 : i32, i32
  }
  func.func @transform_3(%arg0: i32, %arg1: i32) -> (i32, i32, i32) {
    %c0_i32 = arith.constant 0 : i32
    %c0_i32_0 = arith.constant 0 : i32
    return %arg0, %c0_i32, %arg1 : i32, i32, i32
  }
}

</mosaic_0001>

<llo_original>
// kernel: tpu_custom_call.1
$region0: #{tpu_custom_call.1}
  #allocation0 [shape = 'u32[]', space=smem, size = 0x4, offset = 0x4, fixed_abs, tag = 'smem constant byte address 0x4 - core index']
  #allocation1 [shape = 'u32[144,128]{1,0:T(1,128)}', space=vmem, size = 0x12000, scoped, tag = 'internal scratch']
  #allocation2 [shape = 'bf16[1,16,26,4]{3,2,1,0:T(8,128)(2,1)}', space=vmem, size = 0x20000, scoped, tag = 'scratch operand']
  #allocation3 [shape = 'bf16[256,20]{1,0:T(16,128)(2,1)}', space=vmem, size = 0x10000, scoped, tag = 'scratch operand']
  %s0 = inlined_call_operand.vmem [shape: bf16[2,16,16,4], index: 0, kind: input, shape index: {}]
  %s1 = inlined_call_operand.vmem [shape: bf16[20,128], index: 1, kind: input, shape index: {}]
  %s2 = inlined_call_operand.vmem [shape: f32[1,128], index: 2, kind: input, shape index: {}]
  %s3 = inlined_call_operand.hbm [shape: f32[2,256,128], index: 3, kind: output, shape index: {}]
  %s4 = sld [smem:[#allocation0]]
  $region45: #{tpu_custom_call.1} parent=0
    _
  %s6 = ssub.s32 1, %s4
  %s7 = scalar_select 0, %s6, %s4
  $region1: #{tpu_custom_call.1} parent=0
    #allocation4 [shape = 'u8[262144]{0}', space=vmem, size = 0x40000, scoped, tag = 'output window, operand 0']
    #allocation5 [shape = 's32[2]{0}', space=sflag, size = 0x8, scoped, tag = 'scoped memory for tpu_custom_call.1']
    %8 = vsyncpa [#allocation5], 0
    %s9 = scalar_lea.sflag [#allocation5], 1
    %10 = vsyncpa %s9, 0
    loop: start=0, step=1, limit=4
    $region2: #{tpu_custom_call.1} parent=1 // loop_pre_header
      _
    $region3: #{tpu_custom_call.1} parent=1 // loop_header
      %s12 = sphi 0, %s16
      %p13 = scmp.ge.s32.totalorder %s12, 4
      %s19 = sphi 0, %s31
      %s20 = sphi 0, %s27
      %s21 = sphi 0, %s19
      %s22 = sphi 0, %s20
      %s23 = sphi 0, %s21
      %s24 = sphi 0, %s22
      %s34 = sphi 0, %s36
      %s37 = sphi 0, %s34
      %s38 = sphi 0, %s37
      %s54 = sphi 0, %s38
      %s60 = sphi 0, %s62
      %s63 = sphi 0, %s60
      %s64 = sphi 0, %s63
      %s80 = sphi 0, %s64
      %s86 = sphi 0, %s88
      %s89 = sphi 0, %s86
      %s90 = sphi 0, %s89
      %s106 = sphi 0, %s90
      %s114 = sphi 0, %s116
      %s117 = sphi 0, %s114
      %s118 = sphi 0, %s117
      %s134 = sphi 0, %s118
    $region4: #{tpu_custom_call.1} parent=1 // loop_header_branch
      %15 = sbr.rel (%p13) target = $region8
    $region5: #{tpu_custom_call.1} parent=1 // loop_body
      %s17 = ssub.s32 %s12, 1
      %s18 = ssub.s32 %s12, 2
      %s25 = sadd.s32 1, %s20
      %p26 = scmp.ge.s32.totalorder %s25, 1
      %s27 = scalar_select %p26, 0, %s25
      %s28 = sadd.s32 1, %s19
      %s29 = scalar_select %p26, %s28, %s19
      %p30 = scmp.ge.s32.totalorder %s29, 2
      %s31 = scalar_select %p30, 0, %s29
      %s32 = ssub.s32 %s19, %s31
      %p33 = scmp.eq.s32.totalorder %s32, 0
      %s35 = sadd.s32 %s34, 1
      %s36 = scalar_select %p33, %s34, %s35
      %p39 = pneg %p33
      %p40 = scmp.eq.s32.totalorder %s12, 1
      %p41 = por %p39, %p40
      %p42 = scmp.ne.s32.totalorder %s34, %s37
      %p43 = scmp.eq.s32.totalorder %s12, 0
      %p44 = por %p42, %p43
      %p45 = scmp.ne.s32.totalorder %s34, %s37
      %p46 = scmp.eq.s32.totalorder %s17, 1
      %p47 = por %p45, %p46
      %p48 = scmp.ne.s32.totalorder %s37, %s38
      %p49 = scmp.eq.s32.totalorder %s17, 0
      %p50 = por %p48, %p49
      %p51 = scmp.ne.s32.totalorder %s37, %s38
      %p52 = scmp.eq.s32.totalorder %s18, 1
      %p53 = por %p51, %p52
      %p55 = scmp.ne.s32.totalorder %s38, %s54
      %p56 = scmp.eq.s32.totalorder %s18, 0
      %p57 = por %p55, %p56
      %s58 = ssub.s32 %s20, %s27
      %p59 = scmp.eq.s32.totalorder %s58, 0
      %s61 = sadd.s32 %s60, 1
      %s62 = scalar_select %p59, %s60, %s61
      %p65 = pneg %p59
      %p66 = scmp.eq.s32.totalorder %s12, 1
      %p67 = por %p65, %p66
      %p68 = scmp.ne.s32.totalorder %s60, %s63
      %p69 = scmp.eq.s32.totalorder %s12, 0
      %p70 = por %p68, %p69
      %p71 = scmp.ne.s32.totalorder %s60, %s63
      %p72 = scmp.eq.s32.totalorder %s17, 1
      %p73 = por %p71, %p72
      %p74 = scmp.ne.s32.totalorder %s63, %s64
      %p75 = scmp.eq.s32.totalorder %s17, 0
      %p76 = por %p74, %p75
      %p77 = scmp.ne.s32.totalorder %s63, %s64
      %p78 = scmp.eq.s32.totalorder %s18, 1
      %p79 = por %p77, %p78
      %p81 = scmp.ne.s32.totalorder %s64, %s80
      %p82 = scmp.eq.s32.totalorder %s18, 0
      %p83 = por %p81, %p82
      %s84 = ssub.s32 %s20, %s27
      %p85 = scmp.eq.s32.totalorder %s84, 0
      %s87 = sadd.s32 %s86, 1
      %s88 = scalar_select %p85, %s86, %s87
      %p91 = pneg %p85
      %p92 = scmp.eq.s32.totalorder %s12, 1
      %p93 = por %p91, %p92
      %p94 = scmp.ne.s32.totalorder %s86, %s89
      %p95 = scmp.eq.s32.totalorder %s12, 0
      %p96 = por %p94, %p95
      %p97 = scmp.ne.s32.totalorder %s86, %s89
      %p98 = scmp.eq.s32.totalorder %s17, 1
      %p99 = por %p97, %p98
      %p100 = scmp.ne.s32.totalorder %s89, %s90
      %p101 = scmp.eq.s32.totalorder %s17, 0
      %p102 = por %p100, %p101
      %p103 = scmp.ne.s32.totalorder %s89, %s90
      %p104 = scmp.eq.s32.totalorder %s18, 1
      %p105 = por %p103, %p104
      %p107 = scmp.ne.s32.totalorder %s90, %s106
      %p108 = scmp.eq.s32.totalorder %s18, 0
      %p109 = por %p107, %p108
      %s110 = ssub.s32 %s19, %s31
      %s111 = ssub.s32 %s20, %s27
      %s112 = sor.u32 %s110, %s111
      %p113 = scmp.eq.s32.totalorder %s112, 0
      %s115 = sadd.s32 %s114, 1
      %s116 = scalar_select %p113, %s114, %s115
      %p119 = pneg %p113
      %p120 = scmp.eq.s32.totalorder %s12, 1
      %p121 = por %p119, %p120
      %p122 = scmp.ne.s32.totalorder %s114, %s117
      %p123 = scmp.eq.s32.totalorder %s12, 0
      %p124 = por %p122, %p123
      %p125 = scmp.ne.s32.totalorder %s114, %s117
      %p126 = scmp.eq.s32.totalorder %s17, 1
      %p127 = por %p125, %p126
      %p128 = scmp.ne.s32.totalorder %s117, %s118
      %p129 = scmp.eq.s32.totalorder %s17, 0
      %p130 = por %p128, %p129
      %p131 = scmp.ne.s32.totalorder %s117, %s118
      %p132 = scmp.eq.s32.totalorder %s18, 1
      %p133 = por %p131, %p132
      %p135 = scmp.ne.s32.totalorder %s118, %s134
      %p136 = scmp.eq.s32.totalorder %s18, 0
      %p137 = por %p135, %p136
      %p138 = scmp.le.s32.totalorder 1, %s12
      %p139 = scmp.lt.s32.totalorder %s12, 3
      %p140 = pnand %p138, %p139
      %p141 = pneg %p140
      // Predicated region
      $region9: #{tpu_custom_call.1} parent=5 // pred_check
        _
      $region10: #{tpu_custom_call.1} parent=5 // pred_check_branch
        %143 = sbr.rel (%p140) target = $region12
      $region11: #{tpu_custom_call.1} parent=5 // pred_region
        %s144 = ssub.s32 %s12, 1
        // Predicated region
        $region13: #{tpu_custom_call.1} parent=11 // pred_check
          %p145 = pneg %p76
        $region14: #{tpu_custom_call.1} parent=11 // pred_check_branch
          %147 = sbr.rel (%p145) target = $region16
        $region15: #{tpu_custom_call.1} parent=11 // pred_region
          %p148 = scmp.lt.s32.totalorder %s22, 0
          %s149 = scalar_select %p148, %s22, 0
          %s150 = smul.addr %s149, 4
          %s151 = scalar_lea.vmem %s1, %s150
        $region16: #{tpu_custom_call.1} parent=11 // pred_fallthru
          _
        // Predicated region
        $region17: #{tpu_custom_call.1} parent=11 // pred_check
          %p152 = pneg %p102
        $region18: #{tpu_custom_call.1} parent=11 // pred_check_branch
          %154 = sbr.rel (%p152) target = $region20
        $region19: #{tpu_custom_call.1} parent=11 // pred_region
          %p155 = scmp.lt.s32.totalorder %s22, 0
          %s156 = scalar_select %p155, %s22, 0
          %s157 = scalar_lea.vmem %s2, %s156
        $region20: #{tpu_custom_call.1} parent=11 // pred_fallthru
          _
      $region12: #{tpu_custom_call.1} parent=5 // pred_fallthru
        _
      %p158 = scmp.lt.s32.totalorder %s12, 2
      // Predicated region
      $region21: #{tpu_custom_call.1} parent=5 // pred_check
        %p159 = pneg %p158
      $region22: #{tpu_custom_call.1} parent=5 // pred_check_branch
        %161 = sbr.rel (%p159) target = $region24
      $region23: #{tpu_custom_call.1} parent=5 // pred_region
        // Predicated region
        $region25: #{tpu_custom_call.1} parent=23 // pred_check
          %p162 = pneg %p44
        $region26: #{tpu_custom_call.1} parent=23 // pred_check_branch
          %164 = sbr.rel (%p162) target = $region28
        $region27: #{tpu_custom_call.1} parent=23 // pred_region
          %p165 = scmp.lt.s32.totalorder %s19, 1
          %s166 = scalar_select %p165, %s19, 1
          %s167 = smul.addr %s166, 32
          %s168 = smul.addr %s167, 4
          %s169 = scalar_lea.vmem %s0, %s168
        $region28: #{tpu_custom_call.1} parent=23 // pred_fallthru
          _
      $region24: #{tpu_custom_call.1} parent=5 // pred_fallthru
        _
      %p170 = scmp.le.s32.totalorder 1, %s12
      %p171 = scmp.lt.s32.totalorder %s12, 3
      %p172 = pnand %p170, %p171
      %p173 = pneg %p172
      // Predicated region
      $region29: #{tpu_custom_call.1} parent=5 // pred_check
        _
      $region30: #{tpu_custom_call.1} parent=5 // pred_check_branch
        %175 = sbr.rel (%p172) target = $region32
      $region31: #{tpu_custom_call.1} parent=5 // pred_region
        %s176 = ssub.s32 %s12, 1
        %p177 = scmp.lt.s32.totalorder %s21, 1
        %s178 = scalar_select %p177, %s21, 1
        %s179 = smul.addr %s178, 32
        %s180 = smul.addr %s179, 4
        %s181 = scalar_lea.vmem %s0, %s180
        %p182 = pneg %p50
        %p183 = pneg %p47
        %p184 = scmp.lt.s32.totalorder %s22, 0
        %s185 = scalar_select %p184, %s22, 0
        %s186 = smul.addr %s185, 4
        %s187 = scalar_lea.vmem %s1, %s186
        %p188 = pneg %p76
        %p189 = pneg %p73
        %p190 = scmp.lt.s32.totalorder %s22, 0
        %s191 = scalar_select %p190, %s22, 0
        %s192 = scalar_lea.vmem %s2, %s191
        %p193 = pneg %p102
        %p194 = pneg %p99
        %p195 = pneg %p130
        %p196 = pneg %p127
        %s197 = sand.u32 %s117, 1
        %s198 = scalar_lea.sflag [#allocation5], %s197
        %s199 = sand.u32 %s117, 1
        %s200 = smul.addr %s199, 256
        %s201 = scalar_lea.vmem [#allocation4], %s200
        %p202 = scmp.lt.s32.totalorder %s21, 1
        %s203 = scalar_select %p202, %s21, 1
        %s204 = smul.addr %s203, 32
        %s205 = smul.addr %s204, 4
        %s206 = scalar_lea.vmem %s0, %s205
        %p207 = scmp.lt.s32.totalorder %s22, 0
        %s208 = scalar_select %p207, %s22, 0
        %s209 = smul.addr %s208, 4
        %s210 = scalar_lea.vmem %s1, %s209
        %p211 = scmp.lt.s32.totalorder %s22, 0
        %s212 = scalar_select %p211, %s22, 0
        %s213 = scalar_lea.vmem %s2, %s212
        %vm215 = vcmask 27648
        %216 = vst.msk [vmem:[#allocation2] sm:$0xf] %vm215, 0
        %217 = vst.msk [vmem:[#allocation2 + $0x10] sm:$0xf] %vm215, 0
        %218 = vst.msk [vmem:[#allocation2 + $0x20] sm:$0xf] %vm215, 0
        %219 = vst.msk [vmem:[#allocation2 + $0x30] sm:$0xf] %vm215, 0
        %220 = vst.msk [vmem:[#allocation2 + $0x40] sm:$0xf] %vm215, 0
        %221 = vst.msk [vmem:[#allocation2 + $0x50] sm:$0xf] %vm215, 0
        %222 = vst.msk [vmem:[#allocation2 + $0x60] sm:$0xf] %vm215, 0
        %223 = vst.msk [vmem:[#allocation2 + $0x70] sm:$0xf] %vm215, 0
        %224 = vst.msk [vmem:[#allocation2 + $0x80] sm:$0xf] %vm215, 0
        %225 = vst.msk [vmem:[#allocation2 + $0x90] sm:$0xf] %vm215, 0
        %226 = vst.msk [vmem:[#allocation2 + $0xa0] sm:$0xf] %vm215, 0
        %227 = vst.msk [vmem:[#allocation2 + $0xb0] sm:$0xf] %vm215, 0
        %228 = vst.msk [vmem:[#allocation2 + $0xc0] sm:$0xf] %vm215, 0
        %229 = vst.msk [vmem:[#allocation2 + $0xd0] sm:$0xf] %vm215, 0
        %230 = vst.msk [vmem:[#allocation2 + $0xe0] sm:$0xf] %vm215, 0
        %231 = vst.msk [vmem:[#allocation2 + $0xf0] sm:$0xf] %vm215, 0
        %vm232 = vcmask 24576
        %233 = vst.msk [vmem:[#allocation2 + $0xc] sm:$0x1] %vm232, 0
        %234 = vst.msk [vmem:[#allocation2 + $0x1c] sm:$0x1] %vm232, 0
        %235 = vst.msk [vmem:[#allocation2 + $0x2c] sm:$0x1] %vm232, 0
        %236 = vst.msk [vmem:[#allocation2 + $0x3c] sm:$0x1] %vm232, 0
        %237 = vst.msk [vmem:[#allocation2 + $0x4c] sm:$0x1] %vm232, 0
        %238 = vst.msk [vmem:[#allocation2 + $0x5c] sm:$0x1] %vm232, 0
        %239 = vst.msk [vmem:[#allocation2 + $0x6c] sm:$0x1] %vm232, 0
        %240 = vst.msk [vmem:[#allocation2 + $0x7c] sm:$0x1] %vm232, 0
        %241 = vst.msk [vmem:[#allocation2 + $0x8c] sm:$0x1] %vm232, 0
        %242 = vst.msk [vmem:[#allocation2 + $0x9c] sm:$0x1] %vm232, 0
        %243 = vst.msk [vmem:[#allocation2 + $0xac] sm:$0x1] %vm232, 0
        %244 = vst.msk [vmem:[#allocation2 + $0xbc] sm:$0x1] %vm232, 0
        %245 = vst.msk [vmem:[#allocation2 + $0xcc] sm:$0x1] %vm232, 0
        %246 = vst.msk [vmem:[#allocation2 + $0xdc] sm:$0x1] %vm232, 0
        %247 = vst.msk [vmem:[#allocation2 + $0xec] sm:$0x1] %vm232, 0
        %248 = vst.msk [vmem:[#allocation2 + $0xfc] sm:$0x1] %vm232, 0
        %v249 = vld [vmem:[%s206] sm:$0xf]
        %v250 = vld [vmem:[%s206 + $0x4] sm:$0xf]
        %v251 = vld [vmem:[%s206 + $0x8] sm:$0xf]
        %v252 = vld [vmem:[%s206 + $0xc] sm:$0xf]
        %v253 = vld [vmem:[%s206 + $0x10] sm:$0xf]
        %v254 = vld [vmem:[%s206 + $0x14] sm:$0xf]
        %v255 = vld [vmem:[%s206 + $0x18] sm:$0xf]
        %v256 = vld [vmem:[%s206 + $0x1c] sm:$0xf]
        %v257 = vld [vmem:[%s206 + $0x20] sm:$0xf]
        %v258 = vld [vmem:[%s206 + $0x24] sm:$0xf]
        %v259 = vld [vmem:[%s206 + $0x28] sm:$0xf]
        %v260 = vld [vmem:[%s206 + $0x2c] sm:$0xf]
        %v261 = vld [vmem:[%s206 + $0x30] sm:$0xf]
        %v262 = vld [vmem:[%s206 + $0x34] sm:$0xf]
        %v263 = vld [vmem:[%s206 + $0x38] sm:$0xf]
        %v264 = vld [vmem:[%s206 + $0x3c] sm:$0xf]
        %v265 = vld [vmem:[%s206 + $0x40] sm:$0xf]
        %v266 = vld [vmem:[%s206 + $0x44] sm:$0xf]
        %v267 = vld [vmem:[%s206 + $0x48] sm:$0xf]
        %v268 = vld [vmem:[%s206 + $0x4c] sm:$0xf]
        %v269 = vld [vmem:[%s206 + $0x50] sm:$0xf]
        %v270 = vld [vmem:[%s206 + $0x54] sm:$0xf]
        %v271 = vld [vmem:[%s206 + $0x58] sm:$0xf]
        %v272 = vld [vmem:[%s206 + $0x5c] sm:$0xf]
        %v273 = vld [vmem:[%s206 + $0x60] sm:$0xf]
        %v274 = vld [vmem:[%s206 + $0x64] sm:$0xf]
        %v275 = vld [vmem:[%s206 + $0x68] sm:$0xf]
        %v276 = vld [vmem:[%s206 + $0x6c] sm:$0xf]
        %v277 = vld [vmem:[%s206 + $0x70] sm:$0xf]
        %v278 = vld [vmem:[%s206 + $0x74] sm:$0xf]
        %v279 = vld [vmem:[%s206 + $0x78] sm:$0xf]
        %v280 = vld [vmem:[%s206 + $0x7c] sm:$0xf]
        %281 = vst.msk [vmem:[#allocation2 + $0x4] sm:$0xf] %vm215, %v249
        %282 = vst.msk [vmem:[#allocation2 + $0x8] sm:$0xf] %vm215, %v250
        %283 = vst.msk [vmem:[#allocation2 + $0x14] sm:$0xf] %vm215, %v251
        %284 = vst.msk [vmem:[#allocation2 + $0x18] sm:$0xf] %vm215, %v252
        %285 = vst.msk [vmem:[#allocation2 + $0x24] sm:$0xf] %vm215, %v253
        %286 = vst.msk [vmem:[#allocation2 + $0x28] sm:$0xf] %vm215, %v254
        %287 = vst.msk [vmem:[#allocation2 + $0x34] sm:$0xf] %vm215, %v255
        %288 = vst.msk [vmem:[#allocation2 + $0x38] sm:$0xf] %vm215, %v256
        %289 = vst.msk [vmem:[#allocation2 + $0x44] sm:$0xf] %vm215, %v257
        %290 = vst.msk [vmem:[#allocation2 + $0x48] sm:$0xf] %vm215, %v258
        %291 = vst.msk [vmem:[#allocation2 + $0x54] sm:$0xf] %vm215, %v259
        %292 = vst.msk [vmem:[#allocation2 + $0x58] sm:$0xf] %vm215, %v260
        %293 = vst.msk [vmem:[#allocation2 + $0x64] sm:$0xf] %vm215, %v261
        %294 = vst.msk [vmem:[#allocation2 + $0x68] sm:$0xf] %vm215, %v262
        %295 = vst.msk [vmem:[#allocation2 + $0x74] sm:$0xf] %vm215, %v263
        %296 = vst.msk [vmem:[#allocation2 + $0x78] sm:$0xf] %vm215, %v264
        %297 = vst.msk [vmem:[#allocation2 + $0x84] sm:$0xf] %vm215, %v265
        %298 = vst.msk [vmem:[#allocation2 + $0x88] sm:$0xf] %vm215, %v266
        %299 = vst.msk [vmem:[#allocation2 + $0x94] sm:$0xf] %vm215, %v267
        %300 = vst.msk [vmem:[#allocation2 + $0x98] sm:$0xf] %vm215, %v268
        %301 = vst.msk [vmem:[#allocation2 + $0xa4] sm:$0xf] %vm215, %v269
        %302 = vst.msk [vmem:[#allocation2 + $0xa8] sm:$0xf] %vm215, %v270
        %303 = vst.msk [vmem:[#allocation2 + $0xb4] sm:$0xf] %vm215, %v271
        %304 = vst.msk [vmem:[#allocation2 + $0xb8] sm:$0xf] %vm215, %v272
        %305 = vst.msk [vmem:[#allocation2 + $0xc4] sm:$0xf] %vm215, %v273
        %306 = vst.msk [vmem:[#allocation2 + $0xc8] sm:$0xf] %vm215, %v274
        %307 = vst.msk [vmem:[#allocation2 + $0xd4] sm:$0xf] %vm215, %v275
        %308 = vst.msk [vmem:[#allocation2 + $0xd8] sm:$0xf] %vm215, %v276
        %309 = vst.msk [vmem:[#allocation2 + $0xe4] sm:$0xf] %vm215, %v277
        %310 = vst.msk [vmem:[#allocation2 + $0xe8] sm:$0xf] %vm215, %v278
        %311 = vst.msk [vmem:[#allocation2 + $0xf4] sm:$0xf] %vm215, %v279
        %312 = vst.msk [vmem:[#allocation2 + $0xf8] sm:$0xf] %vm215, %v280
        %v313 = vld [vmem:[%s213] sm:$0x1]
        %v314 = vld [vmem:[#allocation2] sm:$0x8]
        %v315 = vld [vmem:[#allocation2 + $0x4] sm:$0xf]
        %v316 = vld [vmem:[#allocation2 + $0x8] sm:$0x7]
        %v317 = vld [vmem:[#allocation2 + $0x10] sm:$0x8]
        %v318 = vld [vmem:[#allocation2 + $0x14] sm:$0xf]
        %v319 = vld [vmem:[#allocation2 + $0x18] sm:$0x7]
        %v320 = vld [vmem:[#allocation2 + $0x20] sm:$0x8]
        %v321 = vld [vmem:[#allocation2 + $0x24] sm:$0xf]
        %v322 = vld [vmem:[#allocation2 + $0x28] sm:$0x7]
        %v323 = vld [vmem:[#allocation2 + $0x30] sm:$0x8]
        %v324 = vld [vmem:[#allocation2 + $0x34] sm:$0xf]
        %v325 = vld [vmem:[#allocation2 + $0x38] sm:$0x7]
        %v326 = vld [vmem:[#allocation2 + $0x40] sm:$0x8]
        %v327 = vld [vmem:[#allocation2 + $0x44] sm:$0xf]
        %v328 = vld [vmem:[#allocation2 + $0x48] sm:$0x7]
        %v329 = vld [vmem:[#allocation2 + $0x50] sm:$0x8]
        %v330 = vld [vmem:[#allocation2 + $0x54] sm:$0xf]
        %v331 = vld [vmem:[#allocation2 + $0x58] sm:$0x7]
        %v332 = vld [vmem:[#allocation2 + $0x60] sm:$0x8]
        %v333 = vld [vmem:[#allocation2 + $0x64] sm:$0xf]
        %v334 = vld [vmem:[#allocation2 + $0x68] sm:$0x7]
        %v335 = vld [vmem:[#allocation2 + $0x70] sm:$0x8]
        %v336 = vld [vmem:[#allocation2 + $0x74] sm:$0xf]
        %v337 = vld [vmem:[#allocation2 + $0x78] sm:$0x7]
        %v338 = vld [vmem:[#allocation2 + $0x80] sm:$0x8]
        %v339 = vld [vmem:[#allocation2 + $0x84] sm:$0xf]
        %v340 = vld [vmem:[#allocation2 + $0x88] sm:$0x7]
        %v341 = vld [vmem:[#allocation2 + $0x90] sm:$0x8]
        %v342 = vld [vmem:[#allocation2 + $0x94] sm:$0xf]
        %v343 = vld [vmem:[#allocation2 + $0x98] sm:$0x7]
        %v344 = vld [vmem:[#allocation2 + $0xa0] sm:$0x8]
        %v345 = vld [vmem:[#allocation2 + $0xa4] sm:$0xf]
        %v346 = vld [vmem:[#allocation2 + $0xa8] sm:$0x7]
        %v347 = vld [vmem:[#allocation2 + $0xb0] sm:$0x8]
        %v348 = vld [vmem:[#allocation2 + $0xb4] sm:$0xf]
        %v349 = vld [vmem:[#allocation2 + $0xb8] sm:$0x7]
        %v350 = vld [vmem:[#allocation2 + $0xc0] sm:$0x8]
        %v351 = vld [vmem:[#allocation2 + $0xc4] sm:$0xf]
        %v352 = vld [vmem:[#allocation2 + $0xc8] sm:$0x7]
        %v353 = vld [vmem:[#allocation2 + $0xd0] sm:$0x8]
        %v354 = vld [vmem:[#allocation2 + $0xd4] sm:$0xf]
        %v355 = vld [vmem:[#allocation2 + $0xd8] sm:$0x7]
        %v356 = vld [vmem:[#allocation2 + $0xe0] sm:$0x8]
        %v357 = vld [vmem:[#allocation2 + $0xe4] sm:$0xf]
        %v358 = vld [vmem:[#allocation2 + $0xe8] sm:$0x7]
        %v359 = vld [vmem:[#allocation2 + $0xf0] sm:$0x8]
        %v360 = vld [vmem:[#allocation2 + $0xf4] sm:$0xf]
        %v361 = vld [vmem:[#allocation2 + $0xf8] sm:$0x7]
        %vm410 = vcmask 1040384
        %vm411 = vcmask 1044484
        %vm412 = vmor %vm410, %vm411
        %v413 = vrot.slane %v314, 7
        %v414 = vrot.slane %v413, 4
        %v415 = vrot.slane %v315, 7
        %v416 = vsel %vm412, %v414, %v415
        %v417 = vrot.slane %v415, 4
        %v418 = vrot.slane %v316, 7
        %v419 = vsel %vm412, %v417, %v418
        %v420 = vrot.slane %v317, 7
        %v421 = vrot.slane %v420, 4
        %v422 = vrot.slane %v318, 7
        %v423 = vsel %vm412, %v421, %v422
        %v424 = vrot.slane %v422, 4
        %v425 = vrot.slane %v319, 7
        %v426 = vsel %vm412, %v424, %v425
        %v427 = vrot.slane %v320, 7
        %v428 = vrot.slane %v427, 4
        %v429 = vrot.slane %v321, 7
        %v430 = vsel %vm412, %v428, %v429
        %v431 = vrot.slane %v429, 4
        %v432 = vrot.slane %v322, 7
        %v433 = vsel %vm412, %v431, %v432
        %v434 = vrot.slane %v323, 7
        %v435 = vrot.slane %v434, 4
        %v436 = vrot.slane %v324, 7
        %v437 = vsel %vm412, %v435, %v436
        %v438 = vrot.slane %v436, 4
        %v439 = vrot.slane %v325, 7
        %v440 = vsel %vm412, %v438, %v439
        %v441 = vrot.slane %v326, 7
        %v442 = vrot.slane %v441, 4
        %v443 = vrot.slane %v327, 7
        %v444 = vsel %vm412, %v442, %v443
        %v445 = vrot.slane %v443, 4
        %v446 = vrot.slane %v328, 7
        %v447 = vsel %vm412, %v445, %v446
        %v448 = vrot.slane %v329, 7
        %v449 = vrot.slane %v448, 4
        %v450 = vrot.slane %v330, 7
        %v451 = vsel %vm412, %v449, %v450
        %v452 = vrot.slane %v450, 4
        %v453 = vrot.slane %v331, 7
        %v454 = vsel %vm412, %v452, %v453
        %v455 = vrot.slane %v332, 7
        %v456 = vrot.slane %v455, 4
        %v457 = vrot.slane %v333, 7
        %v458 = vsel %vm412, %v456, %v457
        %v459 = vrot.slane %v457, 4
        %v460 = vrot.slane %v334, 7
        %v461 = vsel %vm412, %v459, %v460
        %v462 = vrot.slane %v335, 7
        %v463 = vrot.slane %v462, 4
        %v464 = vrot.slane %v336, 7
        %v465 = vsel %vm412, %v463, %v464
        %v466 = vrot.slane %v464, 4
        %v467 = vrot.slane %v337, 7
        %v468 = vsel %vm412, %v466, %v467
        %v469 = vrot.slane %v338, 7
        %v470 = vrot.slane %v469, 4
        %v471 = vrot.slane %v339, 7
        %v472 = vsel %vm412, %v470, %v471
        %v473 = vrot.slane %v471, 4
        %v474 = vrot.slane %v340, 7
        %v475 = vsel %vm412, %v473, %v474
        %v476 = vrot.slane %v341, 7
        %v477 = vrot.slane %v476, 4
        %v478 = vrot.slane %v342, 7
        %v479 = vsel %vm412, %v477, %v478
        %v480 = vrot.slane %v478, 4
        %v481 = vrot.slane %v343, 7
        %v482 = vsel %vm412, %v480, %v481
        %v483 = vrot.slane %v344, 7
        %v484 = vrot.slane %v483, 4
        %v485 = vrot.slane %v345, 7
        %v486 = vsel %vm412, %v484, %v485
        %v487 = vrot.slane %v485, 4
        %v488 = vrot.slane %v346, 7
        %v489 = vsel %vm412, %v487, %v488
        %v490 = vrot.slane %v347, 7
        %v491 = vrot.slane %v490, 4
        %v492 = vrot.slane %v348, 7
        %v493 = vsel %vm412, %v491, %v492
        %v494 = vrot.slane %v492, 4
        %v495 = vrot.slane %v349, 7
        %v496 = vsel %vm412, %v494, %v495
        %v497 = vrot.slane %v350, 7
        %v498 = vrot.slane %v497, 4
        %v499 = vrot.slane %v351, 7
        %v500 = vsel %vm412, %v498, %v499
        %v501 = vrot.slane %v499, 4
        %v502 = vrot.slane %v352, 7
        %v503 = vsel %vm412, %v501, %v502
        %v504 = vrot.slane %v353, 7
        %v505 = vrot.slane %v504, 4
        %v506 = vrot.slane %v354, 7
        %v507 = vsel %vm412, %v505, %v506
        %v508 = vrot.slane %v506, 4
        %v509 = vrot.slane %v355, 7
        %v510 = vsel %vm412, %v508, %v509
        %v511 = vrot.slane %v356, 7
        %v512 = vrot.slane %v511, 4
        %v513 = vrot.slane %v357, 7
        %v514 = vsel %vm412, %v512, %v513
        %v515 = vrot.slane %v513, 4
        %v516 = vrot.slane %v358, 7
        %v517 = vsel %vm412, %v515, %v516
        %v518 = vrot.slane %v359, 7
        %v519 = vrot.slane %v518, 4
        %v520 = vrot.slane %v360, 7
        %v521 = vsel %vm412, %v519, %v520
        %v522 = vrot.slane %v520, 4
        %v523 = vrot.slane %v361, 7
        %v524 = vsel %vm412, %v522, %v523
        %v525 = vunpack.c.l.b16 %v416
        %v526 = vunpack.c.l.b16 %v419
        %v527 = vunpack.c.l.b16 %v423
        %v528 = vunpack.c.l.b16 %v426
        %v529 = vunpack.c.l.b16 %v430
        %v530 = vunpack.c.l.b16 %v433
        %v531 = vunpack.c.l.b16 %v437
        %v532 = vunpack.c.l.b16 %v440
        %v533 = vunpack.c.l.b16 %v444
        %v534 = vunpack.c.l.b16 %v447
        %v535 = vunpack.c.l.b16 %v451
        %v536 = vunpack.c.l.b16 %v454
        %v537 = vunpack.c.l.b16 %v458
        %v538 = vunpack.c.l.b16 %v461
        %v539 = vunpack.c.l.b16 %v465
        %v540 = vunpack.c.l.b16 %v468
        %v541 = vunpack.c.l.b16 %v472
        %v542 = vunpack.c.l.b16 %v475
        %v543 = vunpack.c.l.b16 %v479
        %v544 = vunpack.c.l.b16 %v482
        %v545 = vunpack.c.l.b16 %v486
        %v546 = vunpack.c.l.b16 %v489
        %v547 = vunpack.c.l.b16 %v493
        %v548 = vunpack.c.l.b16 %v496
        %v549 = vunpack.c.l.b16 %v500
        %v550 = vunpack.c.l.b16 %v503
        %v551 = vunpack.c.l.b16 %v507
        %v552 = vunpack.c.l.b16 %v510
        %v553 = vunpack.c.l.b16 %v514
        %v554 = vunpack.c.l.b16 %v517
        %v555 = vunpack.c.l.b16 %v521
        %v556 = vunpack.c.l.b16 %v524
        %v557 = vpack.c.b16 %v526, %v525
        %v558 = vpack.c.b16 %v528, %v527
        %v559 = vpack.c.b16 %v530, %v529
        %v560 = vpack.c.b16 %v532, %v531
        %v561 = vpack.c.b16 %v534, %v533
        %v562 = vpack.c.b16 %v536, %v535
        %v563 = vpack.c.b16 %v538, %v537
        %v564 = vpack.c.b16 %v540, %v539
        %v565 = vpack.c.b16 %v542, %v541
        %v566 = vpack.c.b16 %v544, %v543
        %v567 = vpack.c.b16 %v546, %v545
        %v568 = vpack.c.b16 %v548, %v547
        %v569 = vpack.c.b16 %v550, %v549
        %v570 = vpack.c.b16 %v552, %v551
        %v571 = vpack.c.b16 %v554, %v553
        %v572 = vpack.c.b16 %v556, %v555
        %vm589 = vcmask 31744
        %590 = vst.msk [vmem:[#allocation3] sm:$0xff] %vm589, %v557
        %591 = vst.msk [vmem:[#allocation3 + $0x8] sm:$0xff] %vm589, %v558
        %592 = vst.msk [vmem:[#allocation3 + $0x10] sm:$0xff] %vm589, %v559
        %593 = vst.msk [vmem:[#allocation3 + $0x18] sm:$0xff] %vm589, %v560
        %594 = vst.msk [vmem:[#allocation3 + $0x20] sm:$0xff] %vm589, %v561
        %595 = vst.msk [vmem:[#allocation3 + $0x28] sm:$0xff] %vm589, %v562
        %596 = vst.msk [vmem:[#allocation3 + $0x30] sm:$0xff] %vm589, %v563
        %597 = vst.msk [vmem:[#allocation3 + $0x38] sm:$0xff] %vm589, %v564
        %598 = vst.msk [vmem:[#allocation3 + $0x40] sm:$0xff] %vm589, %v565
        %599 = vst.msk [vmem:[#allocation3 + $0x48] sm:$0xff] %vm589, %v566
        %600 = vst.msk [vmem:[#allocation3 + $0x50] sm:$0xff] %vm589, %v567
        %601 = vst.msk [vmem:[#allocation3 + $0x58] sm:$0xff] %vm589, %v568
        %602 = vst.msk [vmem:[#allocation3 + $0x60] sm:$0xff] %vm589, %v569
        %603 = vst.msk [vmem:[#allocation3 + $0x68] sm:$0xff] %vm589, %v570
        %604 = vst.msk [vmem:[#allocation3 + $0x70] sm:$0xff] %vm589, %v571
        %605 = vst.msk [vmem:[#allocation3 + $0x78] sm:$0xff] %vm589, %v572
        %v606 = vld [vmem:[#allocation2] sm:$0x8]
        %v607 = vld [vmem:[#allocation2 + $0x4] sm:$0xf]
        %v608 = vld [vmem:[#allocation2 + $0x8] sm:$0xf]
        %v609 = vld [vmem:[#allocation2 + $0x10] sm:$0x8]
        %v610 = vld [vmem:[#allocation2 + $0x14] sm:$0xf]
        %v611 = vld [vmem:[#allocation2 + $0x18] sm:$0xf]
        %v612 = vld [vmem:[#allocation2 + $0x20] sm:$0x8]
        %v613 = vld [vmem:[#allocation2 + $0x24] sm:$0xf]
        %v614 = vld [vmem:[#allocation2 + $0x28] sm:$0xf]
        %v615 = vld [vmem:[#allocation2 + $0x30] sm:$0x8]
        %v616 = vld [vmem:[#allocation2 + $0x34] sm:$0xf]
        %v617 = vld [vmem:[#allocation2 + $0x38] sm:$0xf]
        %v618 = vld [vmem:[#allocation2 + $0x40] sm:$0x8]
        %v619 = vld [vmem:[#allocation2 + $0x44] sm:$0xf]
        %v620 = vld [vmem:[#allocation2 + $0x48] sm:$0xf]
        %v621 = vld [vmem:[#allocation2 + $0x50] sm:$0x8]
        %v622 = vld [vmem:[#allocation2 + $0x54] sm:$0xf]
        %v623 = vld [vmem:[#allocation2 + $0x58] sm:$0xf]
        %v624 = vld [vmem:[#allocation2 + $0x60] sm:$0x8]
        %v625 = vld [vmem:[#allocation2 + $0x64] sm:$0xf]
        %v626 = vld [vmem:[#allocation2 + $0x68] sm:$0xf]
        %v627 = vld [vmem:[#allocation2 + $0x70] sm:$0x8]
        %v628 = vld [vmem:[#allocation2 + $0x74] sm:$0xf]
        %v629 = vld [vmem:[#allocation2 + $0x78] sm:$0xf]
        %v630 = vld [vmem:[#allocation2 + $0x80] sm:$0x8]
        %v631 = vld [vmem:[#allocation2 + $0x84] sm:$0xf]
        %v632 = vld [vmem:[#allocation2 + $0x88] sm:$0xf]
        %v633 = vld [vmem:[#allocation2 + $0x90] sm:$0x8]
        %v634 = vld [vmem:[#allocation2 + $0x94] sm:$0xf]
        %v635 = vld [vmem:[#allocation2 + $0x98] sm:$0xf]
        %v636 = vld [vmem:[#allocation2 + $0xa0] sm:$0x8]
        %v637 = vld [vmem:[#allocation2 + $0xa4] sm:$0xf]
        %v638 = vld [vmem:[#allocation2 + $0xa8] sm:$0xf]
        %v639 = vld [vmem:[#allocation2 + $0xb0] sm:$0x8]
        %v640 = vld [vmem:[#allocation2 + $0xb4] sm:$0xf]
        %v641 = vld [vmem:[#allocation2 + $0xb8] sm:$0xf]
        %v642 = vld [vmem:[#allocation2 + $0xc0] sm:$0x8]
        %v643 = vld [vmem:[#allocation2 + $0xc4] sm:$0xf]
        %v644 = vld [vmem:[#allocation2 + $0xc8] sm:$0xf]
        %v645 = vld [vmem:[#allocation2 + $0xd0] sm:$0x8]
        %v646 = vld [vmem:[#allocation2 + $0xd4] sm:$0xf]
        %v647 = vld [vmem:[#allocation2 + $0xd8] sm:$0xf]
        %v648 = vld [vmem:[#allocation2 + $0xe0] sm:$0x8]
        %v649 = vld [vmem:[#allocation2 + $0xe4] sm:$0xf]
        %v650 = vld [vmem:[#allocation2 + $0xe8] sm:$0xf]
        %v651 = vld [vmem:[#allocation2 + $0xf0] sm:$0x8]
        %v652 = vld [vmem:[#allocation2 + $0xf4] sm:$0xf]
        %v653 = vld [vmem:[#allocation2 + $0xf8] sm:$0xf]
        %vm654 = vsmask.f32 256
        %vm655 = vsmask.f32 4368
        %vm656 = vmor %vm654, %vm655
        %v658 = vshrl.u32 %v606, 16
        %v660 = vrot.slane %v658, 7
        %v661 = vrot.slane %v660, 4
        %v663 = vshrl.u32 %v607, 16
        %v665 = vrot.slane %v663, 7
        %v666 = vshll.u32 %v607, 16
        %v668 = vor.u32 %v665, %v666
        %v669 = vsel %vm656, %v661, %v668
        %v670 = vrot.slane %v665, 4
        %v672 = vshrl.u32 %v608, 16
        %v674 = vrot.slane %v672, 7
        %v675 = vshll.u32 %v608, 16
        %v677 = vor.u32 %v674, %v675
        %v678 = vsel %vm656, %v670, %v677
        %v680 = vshrl.u32 %v609, 16
        %v682 = vrot.slane %v680, 7
        %v683 = vrot.slane %v682, 4
        %v685 = vshrl.u32 %v610, 16
        %v687 = vrot.slane %v685, 7
        %v688 = vshll.u32 %v610, 16
        %v690 = vor.u32 %v687, %v688
        %v691 = vsel %vm656, %v683, %v690
        %v692 = vrot.slane %v687, 4
        %v694 = vshrl.u32 %v611, 16
        %v696 = vrot.slane %v694, 7
        %v697 = vshll.u32 %v611, 16
        %v699 = vor.u32 %v696, %v697
        %v700 = vsel %vm656, %v692, %v699
        %v702 = vshrl.u32 %v612, 16
        %v704 = vrot.slane %v702, 7
        %v705 = vrot.slane %v704, 4
        %v707 = vshrl.u32 %v613, 16
        %v709 = vrot.slane %v707, 7
        %v710 = vshll.u32 %v613, 16
        %v712 = vor.u32 %v709, %v710
        %v713 = vsel %vm656, %v705, %v712
        %v714 = vrot.slane %v709, 4
        %v716 = vshrl.u32 %v614, 16
        %v718 = vrot.slane %v716, 7
        %v719 = vshll.u32 %v614, 16
        %v721 = vor.u32 %v718, %v719
        %v722 = vsel %vm656, %v714, %v721
        %v724 = vshrl.u32 %v615, 16
        %v726 = vrot.slane %v724, 7
        %v727 = vrot.slane %v726, 4
        %v729 = vshrl.u32 %v616, 16
        %v731 = vrot.slane %v729, 7
        %v732 = vshll.u32 %v616, 16
        %v734 = vor.u32 %v731, %v732
        %v735 = vsel %vm656, %v727, %v734
        %v736 = vrot.slane %v731, 4
        %v738 = vshrl.u32 %v617, 16
        %v740 = vrot.slane %v738, 7
        %v741 = vshll.u32 %v617, 16
        %v743 = vor.u32 %v740, %v741
        %v744 = vsel %vm656, %v736, %v743
        %v746 = vshrl.u32 %v618, 16
        %v748 = vrot.slane %v746, 7
        %v749 = vrot.slane %v748, 4
        %v751 = vshrl.u32 %v619, 16
        %v753 = vrot.slane %v751, 7
        %v754 = vshll.u32 %v619, 16
        %v756 = vor.u32 %v753, %v754
        %v757 = vsel %vm656, %v749, %v756
        %v758 = vrot.slane %v753, 4
        %v760 = vshrl.u32 %v620, 16
        %v762 = vrot.slane %v760, 7
        %v763 = vshll.u32 %v620, 16
        %v765 = vor.u32 %v762, %v763
        %v766 = vsel %vm656, %v758, %v765
        %v768 = vshrl.u32 %v621, 16
        %v770 = vrot.slane %v768, 7
        %v771 = vrot.slane %v770, 4
        %v773 = vshrl.u32 %v622, 16
        %v775 = vrot.slane %v773, 7
        %v776 = vshll.u32 %v622, 16
        %v778 = vor.u32 %v775, %v776
        %v779 = vsel %vm656, %v771, %v778
        %v780 = vrot.slane %v775, 4
        %v782 = vshrl.u32 %v623, 16
        %v784 = vrot.slane %v782, 7
        %v785 = vshll.u32 %v623, 16
        %v787 = vor.u32 %v784, %v785
        %v788 = vsel %vm656, %v780, %v787
        %v790 = vshrl.u32 %v624, 16
        %v792 = vrot.slane %v790, 7
        %v793 = vrot.slane %v792, 4
        %v795 = vshrl.u32 %v625, 16
        %v797 = vrot.slane %v795, 7
        %v798 = vshll.u32 %v625, 16
        %v800 = vor.u32 %v797, %v798
        %v801 = vsel %vm656, %v793, %v800
        %v802 = vrot.slane %v797, 4
        %v804 = vshrl.u32 %v626, 16
        %v806 = vrot.slane %v804, 7
        %v807 = vshll.u32 %v626, 16
        %v809 = vor.u32 %v806, %v807
        %v810 = vsel %vm656, %v802, %v809
        %v812 = vshrl.u32 %v627, 16
        %v814 = vrot.slane %v812, 7
        %v815 = vrot.slane %v814, 4
        %v817 = vshrl.u32 %v628, 16
        %v819 = vrot.slane %v817, 7
        %v820 = vshll.u32 %v628, 16
        %v822 = vor.u32 %v819, %v820
        %v823 = vsel %vm656, %v815, %v822
        %v824 = vrot.slane %v819, 4
        %v826 = vshrl.u32 %v629, 16
        %v828 = vrot.slane %v826, 7
        %v829 = vshll.u32 %v629, 16
        %v831 = vor.u32 %v828, %v829
        %v832 = vsel %vm656, %v824, %v831
        %v834 = vshrl.u32 %v630, 16
        %v836 = vrot.slane %v834, 7
        %v837 = vrot.slane %v836, 4
        %v839 = vshrl.u32 %v631, 16
        %v841 = vrot.slane %v839, 7
        %v842 = vshll.u32 %v631, 16
        %v844 = vor.u32 %v841, %v842
        %v845 = vsel %vm656, %v837, %v844
        %v846 = vrot.slane %v841, 4
        %v848 = vshrl.u32 %v632, 16
        %v850 = vrot.slane %v848, 7
        %v851 = vshll.u32 %v632, 16
        %v853 = vor.u32 %v850, %v851
        %v854 = vsel %vm656, %v846, %v853
        %v856 = vshrl.u32 %v633, 16
        %v858 = vrot.slane %v856, 7
        %v859 = vrot.slane %v858, 4
        %v861 = vshrl.u32 %v634, 16
        %v863 = vrot.slane %v861, 7
        %v864 = vshll.u32 %v634, 16
        %v866 = vor.u32 %v863, %v864
        %v867 = vsel %vm656, %v859, %v866
        %v868 = vrot.slane %v863, 4
        %v870 = vshrl.u32 %v635, 16
        %v872 = vrot.slane %v870, 7
        %v873 = vshll.u32 %v635, 16
        %v875 = vor.u32 %v872, %v873
        %v876 = vsel %vm656, %v868, %v875
        %v878 = vshrl.u32 %v636, 16
        %v880 = vrot.slane %v878, 7
        %v881 = vrot.slane %v880, 4
        %v883 = vshrl.u32 %v637, 16
        %v885 = vrot.slane %v883, 7
        %v886 = vshll.u32 %v637, 16
        %v888 = vor.u32 %v885, %v886
        %v889 = vsel %vm656, %v881, %v888
        %v890 = vrot.slane %v885, 4
        %v892 = vshrl.u32 %v638, 16
        %v894 = vrot.slane %v892, 7
        %v895 = vshll.u32 %v638, 16
        %v897 = vor.u32 %v894, %v895
        %v898 = vsel %vm656, %v890, %v897
        %v900 = vshrl.u32 %v639, 16
        %v902 = vrot.slane %v900, 7
        %v903 = vrot.slane %v902, 4
        %v905 = vshrl.u32 %v640, 16
        %v907 = vrot.slane %v905, 7
        %v908 = vshll.u32 %v640, 16
        %v910 = vor.u32 %v907, %v908
        %v911 = vsel %vm656, %v903, %v910
        %v912 = vrot.slane %v907, 4
        %v914 = vshrl.u32 %v641, 16
        %v916 = vrot.slane %v914, 7
        %v917 = vshll.u32 %v641, 16
        %v919 = vor.u32 %v916, %v917
        %v920 = vsel %vm656, %v912, %v919
        %v922 = vshrl.u32 %v642, 16
        %v924 = vrot.slane %v922, 7
        %v925 = vrot.slane %v924, 4
        %v927 = vshrl.u32 %v643, 16
        %v929 = vrot.slane %v927, 7
        %v930 = vshll.u32 %v643, 16
        %v932 = vor.u32 %v929, %v930
        %v933 = vsel %vm656, %v925, %v932
        %v934 = vrot.slane %v929, 4
        %v936 = vshrl.u32 %v644, 16
        %v938 = vrot.slane %v936, 7
        %v939 = vshll.u32 %v644, 16
        %v941 = vor.u32 %v938, %v939
        %v942 = vsel %vm656, %v934, %v941
        %v944 = vshrl.u32 %v645, 16
        %v946 = vrot.slane %v944, 7
        %v947 = vrot.slane %v946, 4
        %v949 = vshrl.u32 %v646, 16
        %v951 = vrot.slane %v949, 7
        %v952 = vshll.u32 %v646, 16
        %v954 = vor.u32 %v951, %v952
        %v955 = vsel %vm656, %v947, %v954
        %v956 = vrot.slane %v951, 4
        %v958 = vshrl.u32 %v647, 16
        %v960 = vrot.slane %v958, 7
        %v961 = vshll.u32 %v647, 16
        %v963 = vor.u32 %v960, %v961
        %v964 = vsel %vm656, %v956, %v963
        %v966 = vshrl.u32 %v648, 16
        %v968 = vrot.slane %v966, 7
        %v969 = vrot.slane %v968, 4
        %v971 = vshrl.u32 %v649, 16
        %v973 = vrot.slane %v971, 7
        %v974 = vshll.u32 %v649, 16
        %v976 = vor.u32 %v973, %v974
        %v977 = vsel %vm656, %v969, %v976
        %v978 = vrot.slane %v973, 4
        %v980 = vshrl.u32 %v650, 16
        %v982 = vrot.slane %v980, 7
        %v983 = vshll.u32 %v650, 16
        %v985 = vor.u32 %v982, %v983
        %v986 = vsel %vm656, %v978, %v985
        %v988 = vshrl.u32 %v651, 16
        %v990 = vrot.slane %v988, 7
        %v991 = vrot.slane %v990, 4
        %v993 = vshrl.u32 %v652, 16
        %v995 = vrot.slane %v993, 7
        %v996 = vshll.u32 %v652, 16
        %v998 = vor.u32 %v995, %v996
        %v999 = vsel %vm656, %v991, %v998
        %v1000 = vrot.slane %v995, 4
        %v1002 = vshrl.u32 %v653, 16
        %v1004 = vrot.slane %v1002, 7
        %v1005 = vshll.u32 %v653, 16
        %v1007 = vor.u32 %v1004, %v1005
        %v1008 = vsel %vm656, %v1000, %v1007
        %v1009 = vunpack.c.l.b16 %v669
        %v1010 = vunpack.c.l.b16 %v678
        %v1011 = vunpack.c.l.b16 %v691
        %v1012 = vunpack.c.l.b16 %v700
        %v1013 = vunpack.c.l.b16 %v713
        %v1014 = vunpack.c.l.b16 %v722
        %v1015 = vunpack.c.l.b16 %v735
        %v1016 = vunpack.c.l.b16 %v744
        %v1017 = vunpack.c.l.b16 %v757
        %v1018 = vunpack.c.l.b16 %v766
        %v1019 = vunpack.c.l.b16 %v779
        %v1020 = vunpack.c.l.b16 %v788
        %v1021 = vunpack.c.l.b16 %v801
        %v1022 = vunpack.c.l.b16 %v810
        %v1023 = vunpack.c.l.b16 %v823
        %v1024 = vunpack.c.l.b16 %v832
        %v1025 = vunpack.c.l.b16 %v845
        %v1026 = vunpack.c.l.b16 %v854
        %v1027 = vunpack.c.l.b16 %v867
        %v1028 = vunpack.c.l.b16 %v876
        %v1029 = vunpack.c.l.b16 %v889
        %v1030 = vunpack.c.l.b16 %v898
        %v1031 = vunpack.c.l.b16 %v911
        %v1032 = vunpack.c.l.b16 %v920
        %v1033 = vunpack.c.l.b16 %v933
        %v1034 = vunpack.c.l.b16 %v942
        %v1035 = vunpack.c.l.b16 %v955
        %v1036 = vunpack.c.l.b16 %v964
        %v1037 = vunpack.c.l.b16 %v977
        %v1038 = vunpack.c.l.b16 %v986
        %v1039 = vunpack.c.l.b16 %v999
        %v1040 = vunpack.c.l.b16 %v1008
        %v1041 = vpack.c.b16 %v1010, %v1009
        %v1042 = vpack.c.b16 %v1012, %v1011
        %v1043 = vpack.c.b16 %v1014, %v1013
        %v1044 = vpack.c.b16 %v1016, %v1015
        %v1045 = vpack.c.b16 %v1018, %v1017
        %v1046 = vpack.c.b16 %v1020, %v1019
        %v1047 = vpack.c.b16 %v1022, %v1021
        %v1048 = vpack.c.b16 %v1024, %v1023
        %v1049 = vpack.c.b16 %v1026, %v1025
        %v1050 = vpack.c.b16 %v1028, %v1027
        %v1051 = vpack.c.b16 %v1030, %v1029
        %v1052 = vpack.c.b16 %v1032, %v1031
        %v1053 = vpack.c.b16 %v1034, %v1033
        %v1054 = vpack.c.b16 %v1036, %v1035
        %v1055 = vpack.c.b16 %v1038, %v1037
        %v1056 = vpack.c.b16 %v1040, %v1039
        %1057 = vrot.lane.b32.xlu0 %v1041, 4
        %v1058 = vpop.permute.xlu0 %1057
        %1059 = vrot.lane.b32.xlu0 %v1042, 4
        %v1060 = vpop.permute.xlu0 %1059
        %1061 = vrot.lane.b32.xlu0 %v1043, 4
        %v1062 = vpop.permute.xlu0 %1061
        %1063 = vrot.lane.b32.xlu0 %v1044, 4
        %v1064 = vpop.permute.xlu0 %1063
        %1065 = vrot.lane.b32.xlu0 %v1045, 4
        %v1066 = vpop.permute.xlu0 %1065
        %1067 = vrot.lane.b32.xlu0 %v1046, 4
        %v1068 = vpop.permute.xlu0 %1067
        %1069 = vrot.lane.b32.xlu0 %v1047, 4
        %v1070 = vpop.permute.xlu0 %1069
        %1071 = vrot.lane.b32.xlu0 %v1048, 4
        %v1072 = vpop.permute.xlu0 %1071
        %1073 = vrot.lane.b32.xlu0 %v1049, 4
        %v1074 = vpop.permute.xlu0 %1073
        %1075 = vrot.lane.b32.xlu0 %v1050, 4
        %v1076 = vpop.permute.xlu0 %1075
        %1077 = vrot.lane.b32.xlu0 %v1051, 4
        %v1078 = vpop.permute.xlu0 %1077
        %1079 = vrot.lane.b32.xlu0 %v1052, 4
        %v1080 = vpop.permute.xlu0 %1079
        %1081 = vrot.lane.b32.xlu0 %v1053, 4
        %v1082 = vpop.permute.xlu0 %1081
        %1083 = vrot.lane.b32.xlu0 %v1054, 4
        %v1084 = vpop.permute.xlu0 %1083
        %1085 = vrot.lane.b32.xlu0 %v1055, 4
        %v1086 = vpop.permute.xlu0 %1085
        %1087 = vrot.lane.b32.xlu0 %v1056, 4
        %v1088 = vpop.permute.xlu0 %1087
        %vm1105 = vcmask 64544
        %1106 = vst.msk [vmem:[#allocation3] sm:$0xff] %vm1105, %v1058
        %1107 = vst.msk [vmem:[#allocation3 + $0x8] sm:$0xff] %vm1105, %v1060
        %1108 = vst.msk [vmem:[#allocation3 + $0x10] sm:$0xff] %vm1105, %v1062
        %1109 = vst.msk [vmem:[#allocation3 + $0x18] sm:$0xff] %vm1105, %v1064
        %1110 = vst.msk [vmem:[#allocation3 + $0x20] sm:$0xff] %vm1105, %v1066
        %1111 = vst.msk [vmem:[#allocation3 + $0x28] sm:$0xff] %vm1105, %v1068
        %1112 = vst.msk [vmem:[#allocation3 + $0x30] sm:$0xff] %vm1105, %v1070
        %1113 = vst.msk [vmem:[#allocation3 + $0x38] sm:$0xff] %vm1105, %v1072
        %1114 = vst.msk [vmem:[#allocation3 + $0x40] sm:$0xff] %vm1105, %v1074
        %1115 = vst.msk [vmem:[#allocation3 + $0x48] sm:$0xff] %vm1105, %v1076
        %1116 = vst.msk [vmem:[#allocation3 + $0x50] sm:$0xff] %vm1105, %v1078
        %1117 = vst.msk [vmem:[#allocation3 + $0x58] sm:$0xff] %vm1105, %v1080
        %1118 = vst.msk [vmem:[#allocation3 + $0x60] sm:$0xff] %vm1105, %v1082
        %1119 = vst.msk [vmem:[#allocation3 + $0x68] sm:$0xff] %vm1105, %v1084
        %1120 = vst.msk [vmem:[#allocation3 + $0x70] sm:$0xff] %vm1105, %v1086
        %1121 = vst.msk [vmem:[#allocation3 + $0x78] sm:$0xff] %vm1105, %v1088
        %v1122 = vld [vmem:[#allocation2 + $0x4] sm:$0xf]
        %v1123 = vld [vmem:[#allocation2 + $0x8] sm:$0xf]
        %v1124 = vld [vmem:[#allocation2 + $0x14] sm:$0xf]
        %v1125 = vld [vmem:[#allocation2 + $0x18] sm:$0xf]
        %v1126 = vld [vmem:[#allocation2 + $0x24] sm:$0xf]
        %v1127 = vld [vmem:[#allocation2 + $0x28] sm:$0xf]
        %v1128 = vld [vmem:[#allocation2 + $0x34] sm:$0xf]
        %v1129 = vld [vmem:[#allocation2 + $0x38] sm:$0xf]
        %v1130 = vld [vmem:[#allocation2 + $0x44] sm:$0xf]
        %v1131 = vld [vmem:[#allocation2 + $0x48] sm:$0xf]
        %v1132 = vld [vmem:[#allocation2 + $0x54] sm:$0xf]
        %v1133 = vld [vmem:[#allocation2 + $0x58] sm:$0xf]
        %v1134 = vld [vmem:[#allocation2 + $0x64] sm:$0xf]
        %v1135 = vld [vmem:[#allocation2 + $0x68] sm:$0xf]
        %v1136 = vld [vmem:[#allocation2 + $0x74] sm:$0xf]
        %v1137 = vld [vmem:[#allocation2 + $0x78] sm:$0xf]
        %v1138 = vld [vmem:[#allocation2 + $0x84] sm:$0xf]
        %v1139 = vld [vmem:[#allocation2 + $0x88] sm:$0xf]
        %v1140 = vld [vmem:[#allocation2 + $0x94] sm:$0xf]
        %v1141 = vld [vmem:[#allocation2 + $0x98] sm:$0xf]
        %v1142 = vld [vmem:[#allocation2 + $0xa4] sm:$0xf]
        %v1143 = vld [vmem:[#allocation2 + $0xa8] sm:$0xf]
        %v1144 = vld [vmem:[#allocation2 + $0xb4] sm:$0xf]
        %v1145 = vld [vmem:[#allocation2 + $0xb8] sm:$0xf]
        %v1146 = vld [vmem:[#allocation2 + $0xc4] sm:$0xf]
        %v1147 = vld [vmem:[#allocation2 + $0xc8] sm:$0xf]
        %v1148 = vld [vmem:[#allocation2 + $0xd4] sm:$0xf]
        %v1149 = vld [vmem:[#allocation2 + $0xd8] sm:$0xf]
        %v1150 = vld [vmem:[#allocation2 + $0xe4] sm:$0xf]
        %v1151 = vld [vmem:[#allocation2 + $0xe8] sm:$0xf]
        %v1152 = vld [vmem:[#allocation2 + $0xf4] sm:$0xf]
        %v1153 = vld [vmem:[#allocation2 + $0xf8] sm:$0xf]
        %v1186 = vunpack.c.l.b16 %v1122
        %v1187 = vunpack.c.l.b16 %v1123
        %v1188 = vunpack.c.l.b16 %v1124
        %v1189 = vunpack.c.l.b16 %v1125
        %v1190 = vunpack.c.l.b16 %v1126
        %v1191 = vunpack.c.l.b16 %v1127
        %v1192 = vunpack.c.l.b16 %v1128
        %v1193 = vunpack.c.l.b16 %v1129
        %v1194 = vunpack.c.l.b16 %v1130
        %v1195 = vunpack.c.l.b16 %v1131
        %v1196 = vunpack.c.l.b16 %v1132
        %v1197 = vunpack.c.l.b16 %v1133
        %v1198 = vunpack.c.l.b16 %v1134
        %v1199 = vunpack.c.l.b16 %v1135
        %v1200 = vunpack.c.l.b16 %v1136
        %v1201 = vunpack.c.l.b16 %v1137
        %v1202 = vunpack.c.l.b16 %v1138
        %v1203 = vunpack.c.l.b16 %v1139
        %v1204 = vunpack.c.l.b16 %v1140
        %v1205 = vunpack.c.l.b16 %v1141
        %v1206 = vunpack.c.l.b16 %v1142
        %v1207 = vunpack.c.l.b16 %v1143
        %v1208 = vunpack.c.l.b16 %v1144
        %v1209 = vunpack.c.l.b16 %v1145
        %v1210 = vunpack.c.l.b16 %v1146
        %v1211 = vunpack.c.l.b16 %v1147
        %v1212 = vunpack.c.l.b16 %v1148
        %v1213 = vunpack.c.l.b16 %v1149
        %v1214 = vunpack.c.l.b16 %v1150
        %v1215 = vunpack.c.l.b16 %v1151
        %v1216 = vunpack.c.l.b16 %v1152
        %v1217 = vunpack.c.l.b16 %v1153
        %v1218 = vpack.c.b16 %v1187, %v1186
        %v1219 = vpack.c.b16 %v1189, %v1188
        %v1220 = vpack.c.b16 %v1191, %v1190
        %v1221 = vpack.c.b16 %v1193, %v1192
        %v1222 = vpack.c.b16 %v1195, %v1194
        %v1223 = vpack.c.b16 %v1197, %v1196
        %v1224 = vpack.c.b16 %v1199, %v1198
        %v1225 = vpack.c.b16 %v1201, %v1200
        %v1226 = vpack.c.b16 %v1203, %v1202
        %v1227 = vpack.c.b16 %v1205, %v1204
        %v1228 = vpack.c.b16 %v1207, %v1206
        %v1229 = vpack.c.b16 %v1209, %v1208
        %v1230 = vpack.c.b16 %v1211, %v1210
        %v1231 = vpack.c.b16 %v1213, %v1212
        %v1232 = vpack.c.b16 %v1215, %v1214
        %v1233 = vpack.c.b16 %v1217, %v1216
        %1234 = vrot.lane.b32.xlu0 %v1218, 8
        %v1235 = vpop.permute.xlu0 %1234
        %1236 = vrot.lane.b32.xlu0 %v1219, 8
        %v1237 = vpop.permute.xlu0 %1236
        %1238 = vrot.lane.b32.xlu0 %v1220, 8
        %v1239 = vpop.permute.xlu0 %1238
        %1240 = vrot.lane.b32.xlu0 %v1221, 8
        %v1241 = vpop.permute.xlu0 %1240
        %1242 = vrot.lane.b32.xlu0 %v1222, 8
        %v1243 = vpop.permute.xlu0 %1242
        %1244 = vrot.lane.b32.xlu0 %v1223, 8
        %v1245 = vpop.permute.xlu0 %1244
        %1246 = vrot.lane.b32.xlu0 %v1224, 8
        %v1247 = vpop.permute.xlu0 %1246
        %1248 = vrot.lane.b32.xlu0 %v1225, 8
        %v1249 = vpop.permute.xlu0 %1248
        %1250 = vrot.lane.b32.xlu0 %v1226, 8
        %v1251 = vpop.permute.xlu0 %1250
        %1252 = vrot.lane.b32.xlu0 %v1227, 8
        %v1253 = vpop.permute.xlu0 %1252
        %1254 = vrot.lane.b32.xlu0 %v1228, 8
        %v1255 = vpop.permute.xlu0 %1254
        %1256 = vrot.lane.b32.xlu0 %v1229, 8
        %v1257 = vpop.permute.xlu0 %1256
        %1258 = vrot.lane.b32.xlu0 %v1230, 8
        %v1259 = vpop.permute.xlu0 %1258
        %1260 = vrot.lane.b32.xlu0 %v1231, 8
        %v1261 = vpop.permute.xlu0 %1260
        %1262 = vrot.lane.b32.xlu0 %v1232, 8
        %v1263 = vpop.permute.xlu0 %1262
        %1264 = vrot.lane.b32.xlu0 %v1233, 8
        %v1265 = vpop.permute.xlu0 %1264
        %vm1282 = vcmask 97344
        %1283 = vst.msk [vmem:[#allocation3] sm:$0xff] %vm1282, %v1235
        %1284 = vst.msk [vmem:[#allocation3 + $0x8] sm:$0xff] %vm1282, %v1237
        %1285 = vst.msk [vmem:[#allocation3 + $0x10] sm:$0xff] %vm1282, %v1239
        %1286 = vst.msk [vmem:[#allocation3 + $0x18] sm:$0xff] %vm1282, %v1241
        %1287 = vst.msk [vmem:[#allocation3 + $0x20] sm:$0xff] %vm1282, %v1243
        %1288 = vst.msk [vmem:[#allocation3 + $0x28] sm:$0xff] %vm1282, %v1245
        %1289 = vst.msk [vmem:[#allocation3 + $0x30] sm:$0xff] %vm1282, %v1247
        %1290 = vst.msk [vmem:[#allocation3 + $0x38] sm:$0xff] %vm1282, %v1249
        %1291 = vst.msk [vmem:[#allocation3 + $0x40] sm:$0xff] %vm1282, %v1251
        %1292 = vst.msk [vmem:[#allocation3 + $0x48] sm:$0xff] %vm1282, %v1253
        %1293 = vst.msk [vmem:[#allocation3 + $0x50] sm:$0xff] %vm1282, %v1255
        %1294 = vst.msk [vmem:[#allocation3 + $0x58] sm:$0xff] %vm1282, %v1257
        %1295 = vst.msk [vmem:[#allocation3 + $0x60] sm:$0xff] %vm1282, %v1259
        %1296 = vst.msk [vmem:[#allocation3 + $0x68] sm:$0xff] %vm1282, %v1261
        %1297 = vst.msk [vmem:[#allocation3 + $0x70] sm:$0xff] %vm1282, %v1263
        %1298 = vst.msk [vmem:[#allocation3 + $0x78] sm:$0xff] %vm1282, %v1265
        %v1299 = vld [vmem:[#allocation2 + $0x4] sm:$0xf]
        %v1300 = vld [vmem:[#allocation2 + $0x8] sm:$0xf]
        %v1301 = vld [vmem:[#allocation2 + $0xc] sm:$0x1]
        %v1302 = vld [vmem:[#allocation2 + $0x14] sm:$0xf]
        %v1303 = vld [vmem:[#allocation2 + $0x18] sm:$0xf]
        %v1304 = vld [vmem:[#allocation2 + $0x1c] sm:$0x1]
        %v1305 = vld [vmem:[#allocation2 + $0x24] sm:$0xf]
        %v1306 = vld [vmem:[#allocation2 + $0x28] sm:$0xf]
        %v1307 = vld [vmem:[#allocation2 + $0x2c] sm:$0x1]
        %v1308 = vld [vmem:[#allocation2 + $0x34] sm:$0xf]
        %v1309 = vld [vmem:[#allocation2 + $0x38] sm:$0xf]
        %v1310 = vld [vmem:[#allocation2 + $0x3c] sm:$0x1]
        %v1311 = vld [vmem:[#allocation2 + $0x44] sm:$0xf]
        %v1312 = vld [vmem:[#allocation2 + $0x48] sm:$0xf]
        %v1313 = vld [vmem:[#allocation2 + $0x4c] sm:$0x1]
        %v1314 = vld [vmem:[#allocation2 + $0x54] sm:$0xf]
        %v1315 = vld [vmem:[#allocation2 + $0x58] sm:$0xf]
        %v1316 = vld [vmem:[#allocation2 + $0x5c] sm:$0x1]
        %v1317 = vld [vmem:[#allocation2 + $0x64] sm:$0xf]
        %v1318 = vld [vmem:[#allocation2 + $0x68] sm:$0xf]
        %v1319 = vld [vmem:[#allocation2 + $0x6c] sm:$0x1]
        %v1320 = vld [vmem:[#allocation2 + $0x74] sm:$0xf]
        %v1321 = vld [vmem:[#allocation2 + $0x78] sm:$0xf]
        %v1322 = vld [vmem:[#allocation2 + $0x7c] sm:$0x1]
        %v1323 = vld [vmem:[#allocation2 + $0x84] sm:$0xf]
        %v1324 = vld [vmem:[#allocation2 + $0x88] sm:$0xf]
        %v1325 = vld [vmem:[#allocation2 + $0x8c] sm:$0x1]
        %v1326 = vld [vmem:[#allocation2 + $0x94] sm:$0xf]
        %v1327 = vld [vmem:[#allocation2 + $0x98] sm:$0xf]
        %v1328 = vld [vmem:[#allocation2 + $0x9c] sm:$0x1]
        %v1329 = vld [vmem:[#allocation2 + $0xa4] sm:$0xf]
        %v1330 = vld [vmem:[#allocation2 + $0xa8] sm:$0xf]
        %v1331 = vld [vmem:[#allocation2 + $0xac] sm:$0x1]
        %v1332 = vld [vmem:[#allocation2 + $0xb4] sm:$0xf]
        %v1333 = vld [vmem:[#allocation2 + $0xb8] sm:$0xf]
        %v1334 = vld [vmem:[#allocation2 + $0xbc] sm:$0x1]
        %v1335 = vld [vmem:[#allocation2 + $0xc4] sm:$0xf]
        %v1336 = vld [vmem:[#allocation2 + $0xc8] sm:$0xf]
        %v1337 = vld [vmem:[#allocation2 + $0xcc] sm:$0x1]
        %v1338 = vld [vmem:[#allocation2 + $0xd4] sm:$0xf]
        %v1339 = vld [vmem:[#allocation2 + $0xd8] sm:$0xf]
        %v1340 = vld [vmem:[#allocation2 + $0xdc] sm:$0x1]
        %v1341 = vld [vmem:[#allocation2 + $0xe4] sm:$0xf]
        %v1342 = vld [vmem:[#allocation2 + $0xe8] sm:$0xf]
        %v1343 = vld [vmem:[#allocation2 + $0xec] sm:$0x1]
        %v1344 = vld [vmem:[#allocation2 + $0xf4] sm:$0xf]
        %v1345 = vld [vmem:[#allocation2 + $0xf8] sm:$0xf]
        %v1346 = vld [vmem:[#allocation2 + $0xfc] sm:$0x1]
        %vm1347 = vsmask.f32 3328
        %vm1348 = vsmask.f32 7440
        %vm1349 = vmor %vm1347, %vm1348
        %v1351 = vshrl.u32 %v1299, 16
        %v1353 = vrot.slane %v1351, 4
        %v1354 = vshll.u32 %v1299, 16
        %v1356 = vrot.slane %v1354, 5
        %v1357 = vor.u32 %v1353, %v1356
        %v1358 = vrot.slane %v1357, 4
        %v1360 = vshll.u32 %v1300, 16
        %v1362 = vrot.slane %v1360, 5
        %v1363 = vsel %vm1349, %v1358, %v1362
        %v1364 = vshrl.u32 %v1300, 16
        %v1366 = vrot.slane %v1364, 4
        %v1367 = vor.u32 %v1366, %v1362
        %v1368 = vrot.slane %v1367, 4
        %v1370 = vshll.u32 %v1301, 16
        %v1372 = vrot.slane %v1370, 5
        %v1373 = vsel %vm1349, %v1368, %v1372
        %v1375 = vshrl.u32 %v1302, 16
        %v1377 = vrot.slane %v1375, 4
        %v1378 = vshll.u32 %v1302, 16
        %v1380 = vrot.slane %v1378, 5
        %v1381 = vor.u32 %v1377, %v1380
        %v1382 = vrot.slane %v1381, 4
        %v1384 = vshll.u32 %v1303, 16
        %v1386 = vrot.slane %v1384, 5
        %v1387 = vsel %vm1349, %v1382, %v1386
        %v1388 = vshrl.u32 %v1303, 16
        %v1390 = vrot.slane %v1388, 4
        %v1391 = vor.u32 %v1390, %v1386
        %v1392 = vrot.slane %v1391, 4
        %v1394 = vshll.u32 %v1304, 16
        %v1396 = vrot.slane %v1394, 5
        %v1397 = vsel %vm1349, %v1392, %v1396
        %v1399 = vshrl.u32 %v1305, 16
        %v1401 = vrot.slane %v1399, 4
        %v1402 = vshll.u32 %v1305, 16
        %v1404 = vrot.slane %v1402, 5
        %v1405 = vor.u32 %v1401, %v1404
        %v1406 = vrot.slane %v1405, 4
        %v1408 = vshll.u32 %v1306, 16
        %v1410 = vrot.slane %v1408, 5
        %v1411 = vsel %vm1349, %v1406, %v1410
        %v1412 = vshrl.u32 %v1306, 16
        %v1414 = vrot.slane %v1412, 4
        %v1415 = vor.u32 %v1414, %v1410
        %v1416 = vrot.slane %v1415, 4
        %v1418 = vshll.u32 %v1307, 16
        %v1420 = vrot.slane %v1418, 5
        %v1421 = vsel %vm1349, %v1416, %v1420
        %v1423 = vshrl.u32 %v1308, 16
        %v1425 = vrot.slane %v1423, 4
        %v1426 = vshll.u32 %v1308, 16
        %v1428 = vrot.slane %v1426, 5
        %v1429 = vor.u32 %v1425, %v1428
        %v1430 = vrot.slane %v1429, 4
        %v1432 = vshll.u32 %v1309, 16
        %v1434 = vrot.slane %v1432, 5
        %v1435 = vsel %vm1349, %v1430, %v1434
        %v1436 = vshrl.u32 %v1309, 16
        %v1438 = vrot.slane %v1436, 4
        %v1439 = vor.u32 %v1438, %v1434
        %v1440 = vrot.slane %v1439, 4
        %v1442 = vshll.u32 %v1310, 16
        %v1444 = vrot.slane %v1442, 5
        %v1445 = vsel %vm1349, %v1440, %v1444
        %v1447 = vshrl.u32 %v1311, 16
        %v1449 = vrot.slane %v1447, 4
        %v1450 = vshll.u32 %v1311, 16
        %v1452 = vrot.slane %v1450, 5
        %v1453 = vor.u32 %v1449, %v1452
        %v1454 = vrot.slane %v1453, 4
        %v1456 = vshll.u32 %v1312, 16
        %v1458 = vrot.slane %v1456, 5
        %v1459 = vsel %vm1349, %v1454, %v1458
        %v1460 = vshrl.u32 %v1312, 16
        %v1462 = vrot.slane %v1460, 4
        %v1463 = vor.u32 %v1462, %v1458
        %v1464 = vrot.slane %v1463, 4
        %v1466 = vshll.u32 %v1313, 16
        %v1468 = vrot.slane %v1466, 5
        %v1469 = vsel %vm1349, %v1464, %v1468
        %v1471 = vshrl.u32 %v1314, 16
        %v1473 = vrot.slane %v1471, 4
        %v1474 = vshll.u32 %v1314, 16
        %v1476 = vrot.slane %v1474, 5
        %v1477 = vor.u32 %v1473, %v1476
        %v1478 = vrot.slane %v1477, 4
        %v1480 = vshll.u32 %v1315, 16
        %v1482 = vrot.slane %v1480, 5
        %v1483 = vsel %vm1349, %v1478, %v1482
        %v1484 = vshrl.u32 %v1315, 16
        %v1486 = vrot.slane %v1484, 4
        %v1487 = vor.u32 %v1486, %v1482
        %v1488 = vrot.slane %v1487, 4
        %v1490 = vshll.u32 %v1316, 16
        %v1492 = vrot.slane %v1490, 5
        %v1493 = vsel %vm1349, %v1488, %v1492
        %v1495 = vshrl.u32 %v1317, 16
        %v1497 = vrot.slane %v1495, 4
        %v1498 = vshll.u32 %v1317, 16
        %v1500 = vrot.slane %v1498, 5
        %v1501 = vor.u32 %v1497, %v1500
        %v1502 = vrot.slane %v1501, 4
        %v1504 = vshll.u32 %v1318, 16
        %v1506 = vrot.slane %v1504, 5
        %v1507 = vsel %vm1349, %v1502, %v1506
        %v1508 = vshrl.u32 %v1318, 16
        %v1510 = vrot.slane %v1508, 4
        %v1511 = vor.u32 %v1510, %v1506
        %v1512 = vrot.slane %v1511, 4
        %v1514 = vshll.u32 %v1319, 16
        %v1516 = vrot.slane %v1514, 5
        %v1517 = vsel %vm1349, %v1512, %v1516
        %v1519 = vshrl.u32 %v1320, 16
        %v1521 = vrot.slane %v1519, 4
        %v1522 = vshll.u32 %v1320, 16
        %v1524 = vrot.slane %v1522, 5
        %v1525 = vor.u32 %v1521, %v1524
        %v1526 = vrot.slane %v1525, 4
        %v1528 = vshll.u32 %v1321, 16
        %v1530 = vrot.slane %v1528, 5
        %v1531 = vsel %vm1349, %v1526, %v1530
        %v1532 = vshrl.u32 %v1321, 16
        %v1534 = vrot.slane %v1532, 4
        %v1535 = vor.u32 %v1534, %v1530
        %v1536 = vrot.slane %v1535, 4
        %v1538 = vshll.u32 %v1322, 16
        %v1540 = vrot.slane %v1538, 5
        %v1541 = vsel %vm1349, %v1536, %v1540
        %v1543 = vshrl.u32 %v1323, 16
        %v1545 = vrot.slane %v1543, 4
        %v1546 = vshll.u32 %v1323, 16
        %v1548 = vrot.slane %v1546, 5
        %v1549 = vor.u32 %v1545, %v1548
        %v1550 = vrot.slane %v1549, 4
        %v1552 = vshll.u32 %v1324, 16
        %v1554 = vrot.slane %v1552, 5
        %v1555 = vsel %vm1349, %v1550, %v1554
        %v1556 = vshrl.u32 %v1324, 16
        %v1558 = vrot.slane %v1556, 4
        %v1559 = vor.u32 %v1558, %v1554
        %v1560 = vrot.slane %v1559, 4
        %v1562 = vshll.u32 %v1325, 16
        %v1564 = vrot.slane %v1562, 5
        %v1565 = vsel %vm1349, %v1560, %v1564
        %v1567 = vshrl.u32 %v1326, 16
        %v1569 = vrot.slane %v1567, 4
        %v1570 = vshll.u32 %v1326, 16
        %v1572 = vrot.slane %v1570, 5
        %v1573 = vor.u32 %v1569, %v1572
        %v1574 = vrot.slane %v1573, 4
        %v1576 = vshll.u32 %v1327, 16
        %v1578 = vrot.slane %v1576, 5
        %v1579 = vsel %vm1349, %v1574, %v1578
        %v1580 = vshrl.u32 %v1327, 16
        %v1582 = vrot.slane %v1580, 4
        %v1583 = vor.u32 %v1582, %v1578
        %v1584 = vrot.slane %v1583, 4
        %v1586 = vshll.u32 %v1328, 16
        %v1588 = vrot.slane %v1586, 5
        %v1589 = vsel %vm1349, %v1584, %v1588
        %v1591 = vshrl.u32 %v1329, 16
        %v1593 = vrot.slane %v1591, 4
        %v1594 = vshll.u32 %v1329, 16
        %v1596 = vrot.slane %v1594, 5
        %v1597 = vor.u32 %v1593, %v1596
        %v1598 = vrot.slane %v1597, 4
        %v1600 = vshll.u32 %v1330, 16
        %v1602 = vrot.slane %v1600, 5
        %v1603 = vsel %vm1349, %v1598, %v1602
        %v1604 = vshrl.u32 %v1330, 16
        %v1606 = vrot.slane %v1604, 4
        %v1607 = vor.u32 %v1606, %v1602
        %v1608 = vrot.slane %v1607, 4
        %v1610 = vshll.u32 %v1331, 16
        %v1612 = vrot.slane %v1610, 5
        %v1613 = vsel %vm1349, %v1608, %v1612
        %v1615 = vshrl.u32 %v1332, 16
        %v1617 = vrot.slane %v1615, 4
        %v1618 = vshll.u32 %v1332, 16
        %v1620 = vrot.slane %v1618, 5
        %v1621 = vor.u32 %v1617, %v1620
        %v1622 = vrot.slane %v1621, 4
        %v1624 = vshll.u32 %v1333, 16
        %v1626 = vrot.slane %v1624, 5
        %v1627 = vsel %vm1349, %v1622, %v1626
        %v1628 = vshrl.u32 %v1333, 16
        %v1630 = vrot.slane %v1628, 4
        %v1631 = vor.u32 %v1630, %v1626
        %v1632 = vrot.slane %v1631, 4
        %v1634 = vshll.u32 %v1334, 16
        %v1636 = vrot.slane %v1634, 5
        %v1637 = vsel %vm1349, %v1632, %v1636
        %v1639 = vshrl.u32 %v1335, 16
        %v1641 = vrot.slane %v1639, 4
        %v1642 = vshll.u32 %v1335, 16
        %v1644 = vrot.slane %v1642, 5
        %v1645 = vor.u32 %v1641, %v1644
        %v1646 = vrot.slane %v1645, 4
        %v1648 = vshll.u32 %v1336, 16
        %v1650 = vrot.slane %v1648, 5
        %v1651 = vsel %vm1349, %v1646, %v1650
        %v1652 = vshrl.u32 %v1336, 16
        %v1654 = vrot.slane %v1652, 4
        %v1655 = vor.u32 %v1654, %v1650
        %v1656 = vrot.slane %v1655, 4
        %v1658 = vshll.u32 %v1337, 16
        %v1660 = vrot.slane %v1658, 5
        %v1661 = vsel %vm1349, %v1656, %v1660
        %v1663 = vshrl.u32 %v1338, 16
        %v1665 = vrot.slane %v1663, 4
        %v1666 = vshll.u32 %v1338, 16
        %v1668 = vrot.slane %v1666, 5
        %v1669 = vor.u32 %v1665, %v1668
        %v1670 = vrot.slane %v1669, 4
        %v1672 = vshll.u32 %v1339, 16
        %v1674 = vrot.slane %v1672, 5
        %v1675 = vsel %vm1349, %v1670, %v1674
        %v1676 = vshrl.u32 %v1339, 16
        %v1678 = vrot.slane %v1676, 4
        %v1679 = vor.u32 %v1678, %v1674
        %v1680 = vrot.slane %v1679, 4
        %v1682 = vshll.u32 %v1340, 16
        %v1684 = vrot.slane %v1682, 5
        %v1685 = vsel %vm1349, %v1680, %v1684
        %v1687 = vshrl.u32 %v1341, 16
        %v1689 = vrot.slane %v1687, 4
        %v1690 = vshll.u32 %v1341, 16
        %v1692 = vrot.slane %v1690, 5
        %v1693 = vor.u32 %v1689, %v1692
        %v1694 = vrot.slane %v1693, 4
        %v1696 = vshll.u32 %v1342, 16
        %v1698 = vrot.slane %v1696, 5
        %v1699 = vsel %vm1349, %v1694, %v1698
        %v1700 = vshrl.u32 %v1342, 16
        %v1702 = vrot.slane %v1700, 4
        %v1703 = vor.u32 %v1702, %v1698
        %v1704 = vrot.slane %v1703, 4
        %v1706 = vshll.u32 %v1343, 16
        %v1708 = vrot.slane %v1706, 5
        %v1709 = vsel %vm1349, %v1704, %v1708
        %v1711 = vshrl.u32 %v1344, 16
        %v1713 = vrot.slane %v1711, 4
        %v1714 = vshll.u32 %v1344, 16
        %v1716 = vrot.slane %v1714, 5
        %v1717 = vor.u32 %v1713, %v1716
        %v1718 = vrot.slane %v1717, 4
        %v1720 = vshll.u32 %v1345, 16
        %v1722 = vrot.slane %v1720, 5
        %v1723 = vsel %vm1349, %v1718, %v1722
        %v1724 = vshrl.u32 %v1345, 16
        %v1726 = vrot.slane %v1724, 4
        %v1727 = vor.u32 %v1726, %v1722
        %v1728 = vrot.slane %v1727, 4
        %v1730 = vshll.u32 %v1346, 16
        %v1732 = vrot.slane %v1730, 5
        %v1733 = vsel %vm1349, %v1728, %v1732
        %v1734 = vunpack.c.l.b16 %v1363
        %v1735 = vunpack.c.l.b16 %v1373
        %v1736 = vunpack.c.l.b16 %v1387
        %v1737 = vunpack.c.l.b16 %v1397
        %v1738 = vunpack.c.l.b16 %v1411
        %v1739 = vunpack.c.l.b16 %v1421
        %v1740 = vunpack.c.l.b16 %v1435
        %v1741 = vunpack.c.l.b16 %v1445
        %v1742 = vunpack.c.l.b16 %v1459
        %v1743 = vunpack.c.l.b16 %v1469
        %v1744 = vunpack.c.l.b16 %v1483
        %v1745 = vunpack.c.l.b16 %v1493
        %v1746 = vunpack.c.l.b16 %v1507
        %v1747 = vunpack.c.l.b16 %v1517
        %v1748 = vunpack.c.l.b16 %v1531
        %v1749 = vunpack.c.l.b16 %v1541
        %v1750 = vunpack.c.l.b16 %v1555
        %v1751 = vunpack.c.l.b16 %v1565
        %v1752 = vunpack.c.l.b16 %v1579
        %v1753 = vunpack.c.l.b16 %v1589
        %v1754 = vunpack.c.l.b16 %v1603
        %v1755 = vunpack.c.l.b16 %v1613
        %v1756 = vunpack.c.l.b16 %v1627
        %v1757 = vunpack.c.l.b16 %v1637
        %v1758 = vunpack.c.l.b16 %v1651
        %v1759 = vunpack.c.l.b16 %v1661
        %v1760 = vunpack.c.l.b16 %v1675
        %v1761 = vunpack.c.l.b16 %v1685
        %v1762 = vunpack.c.l.b16 %v1699
        %v1763 = vunpack.c.l.b16 %v1709
        %v1764 = vunpack.c.l.b16 %v1723
        %v1765 = vunpack.c.l.b16 %v1733
        %v1766 = vpack.c.b16 %v1735, %v1734
        %v1767 = vpack.c.b16 %v1737, %v1736
        %v1768 = vpack.c.b16 %v1739, %v1738
        %v1769 = vpack.c.b16 %v1741, %v1740
        %v1770 = vpack.c.b16 %v1743, %v1742
        %v1771 = vpack.c.b16 %v1745, %v1744
        %v1772 = vpack.c.b16 %v1747, %v1746
        %v1773 = vpack.c.b16 %v1749, %v1748
        %v1774 = vpack.c.b16 %v1751, %v1750
        %v1775 = vpack.c.b16 %v1753, %v1752
        %v1776 = vpack.c.b16 %v1755, %v1754
        %v1777 = vpack.c.b16 %v1757, %v1756
        %v1778 = vpack.c.b16 %v1759, %v1758
        %v1779 = vpack.c.b16 %v1761, %v1760
        %v1780 = vpack.c.b16 %v1763, %v1762
        %v1781 = vpack.c.b16 %v1765, %v1764
        %1782 = vrot.lane.b32.xlu0 %v1766, 12
        %v1783 = vpop.permute.xlu0 %1782
        %1784 = vrot.lane.b32.xlu0 %v1767, 12
        %v1785 = vpop.permute.xlu0 %1784
        %1786 = vrot.lane.b32.xlu0 %v1768, 12
        %v1787 = vpop.permute.xlu0 %1786
        %1788 = vrot.lane.b32.xlu0 %v1769, 12
        %v1789 = vpop.permute.xlu0 %1788
        %1790 = vrot.lane.b32.xlu0 %v1770, 12
        %v1791 = vpop.permute.xlu0 %1790
        %1792 = vrot.lane.b32.xlu0 %v1771, 12
        %v1793 = vpop.permute.xlu0 %1792
        %1794 = vrot.lane.b32.xlu0 %v1772, 12
        %v1795 = vpop.permute.xlu0 %1794
        %1796 = vrot.lane.b32.xlu0 %v1773, 12
        %v1797 = vpop.permute.xlu0 %1796
        %1798 = vrot.lane.b32.xlu0 %v1774, 12
        %v1799 = vpop.permute.xlu0 %1798
        %1800 = vrot.lane.b32.xlu0 %v1775, 12
        %v1801 = vpop.permute.xlu0 %1800
        %1802 = vrot.lane.b32.xlu0 %v1776, 12
        %v1803 = vpop.permute.xlu0 %1802
        %1804 = vrot.lane.b32.xlu0 %v1777, 12
        %v1805 = vpop.permute.xlu0 %1804
        %1806 = vrot.lane.b32.xlu0 %v1778, 12
        %v1807 = vpop.permute.xlu0 %1806
        %1808 = vrot.lane.b32.xlu0 %v1779, 12
        %v1809 = vpop.permute.xlu0 %1808
        %1810 = vrot.lane.b32.xlu0 %v1780, 12
        %v1811 = vpop.permute.xlu0 %1810
        %1812 = vrot.lane.b32.xlu0 %v1781, 12
        %v1813 = vpop.permute.xlu0 %1812
        %vm1830 = vcmask 130144
        %1831 = vst.msk [vmem:[#allocation3] sm:$0xff] %vm1830, %v1783
        %1832 = vst.msk [vmem:[#allocation3 + $0x8] sm:$0xff] %vm1830, %v1785
        %1833 = vst.msk [vmem:[#allocation3 + $0x10] sm:$0xff] %vm1830, %v1787
        %1834 = vst.msk [vmem:[#allocation3 + $0x18] sm:$0xff] %vm1830, %v1789
        %1835 = vst.msk [vmem:[#allocation3 + $0x20] sm:$0xff] %vm1830, %v1791
        %1836 = vst.msk [vmem:[#allocation3 + $0x28] sm:$0xff] %vm1830, %v1793
        %1837 = vst.msk [vmem:[#allocation3 + $0x30] sm:$0xff] %vm1830, %v1795
        %1838 = vst.msk [vmem:[#allocation3 + $0x38] sm:$0xff] %vm1830, %v1797
        %1839 = vst.msk [vmem:[#allocation3 + $0x40] sm:$0xff] %vm1830, %v1799
        %1840 = vst.msk [vmem:[#allocation3 + $0x48] sm:$0xff] %vm1830, %v1801
        %1841 = vst.msk [vmem:[#allocation3 + $0x50] sm:$0xff] %vm1830, %v1803
        %1842 = vst.msk [vmem:[#allocation3 + $0x58] sm:$0xff] %vm1830, %v1805
        %1843 = vst.msk [vmem:[#allocation3 + $0x60] sm:$0xff] %vm1830, %v1807
        %1844 = vst.msk [vmem:[#allocation3 + $0x68] sm:$0xff] %vm1830, %v1809
        %1845 = vst.msk [vmem:[#allocation3 + $0x70] sm:$0xff] %vm1830, %v1811
        %1846 = vst.msk [vmem:[#allocation3 + $0x78] sm:$0xff] %vm1830, %v1813
        %v1847 = vld [vmem:[#allocation2 + $0x4] sm:$0xe]
        %v1848 = vld [vmem:[#allocation2 + $0x8] sm:$0xf]
        %v1849 = vld [vmem:[#allocation2 + $0xc] sm:$0x1]
        %v1850 = vld [vmem:[#allocation2 + $0x14] sm:$0xe]
        %v1851 = vld [vmem:[#allocation2 + $0x18] sm:$0xf]
        %v1852 = vld [vmem:[#allocation2 + $0x1c] sm:$0x1]
        %v1853 = vld [vmem:[#allocation2 + $0x24] sm:$0xe]
        %v1854 = vld [vmem:[#allocation2 + $0x28] sm:$0xf]
        %v1855 = vld [vmem:[#allocation2 + $0x2c] sm:$0x1]
        %v1856 = vld [vmem:[#allocation2 + $0x34] sm:$0xe]
        %v1857 = vld [vmem:[#allocation2 + $0x38] sm:$0xf]
        %v1858 = vld [vmem:[#allocation2 + $0x3c] sm:$0x1]
        %v1859 = vld [vmem:[#allocation2 + $0x44] sm:$0xe]
        %v1860 = vld [vmem:[#allocation2 + $0x48] sm:$0xf]
        %v1861 = vld [vmem:[#allocation2 + $0x4c] sm:$0x1]
        %v1862 = vld [vmem:[#allocation2 + $0x54] sm:$0xe]
        %v1863 = vld [vmem:[#allocation2 + $0x58] sm:$0xf]
        %v1864 = vld [vmem:[#allocation2 + $0x5c] sm:$0x1]
        %v1865 = vld [vmem:[#allocation2 + $0x64] sm:$0xe]
        %v1866 = vld [vmem:[#allocation2 + $0x68] sm:$0xf]
        %v1867 = vld [vmem:[#allocation2 + $0x6c] sm:$0x1]
        %v1868 = vld [vmem:[#allocation2 + $0x74] sm:$0xe]
        %v1869 = vld [vmem:[#allocation2 + $0x78] sm:$0xf]
        %v1870 = vld [vmem:[#allocation2 + $0x7c] sm:$0x1]
        %v1871 = vld [vmem:[#allocation2 + $0x84] sm:$0xe]
        %v1872 = vld [vmem:[#allocation2 + $0x88] sm:$0xf]
        %v1873 = vld [vmem:[#allocation2 + $0x8c] sm:$0x1]
        %v1874 = vld [vmem:[#allocation2 + $0x94] sm:$0xe]
        %v1875 = vld [vmem:[#allocation2 + $0x98] sm:$0xf]
        %v1876 = vld [vmem:[#allocation2 + $0x9c] sm:$0x1]
        %v1877 = vld [vmem:[#allocation2 + $0xa4] sm:$0xe]
        %v1878 = vld [vmem:[#allocation2 + $0xa8] sm:$0xf]
        %v1879 = vld [vmem:[#allocation2 + $0xac] sm:$0x1]
        %v1880 = vld [vmem:[#allocation2 + $0xb4] sm:$0xe]
        %v1881 = vld [vmem:[#allocation2 + $0xb8] sm:$0xf]
        %v1882 = vld [vmem:[#allocation2 + $0xbc] sm:$0x1]
        %v1883 = vld [vmem:[#allocation2 + $0xc4] sm:$0xe]
        %v1884 = vld [vmem:[#allocation2 + $0xc8] sm:$0xf]
        %v1885 = vld [vmem:[#allocation2 + $0xcc] sm:$0x1]
        %v1886 = vld [vmem:[#allocation2 + $0xd4] sm:$0xe]
        %v1887 = vld [vmem:[#allocation2 + $0xd8] sm:$0xf]
        %v1888 = vld [vmem:[#allocation2 + $0xdc] sm:$0x1]
        %v1889 = vld [vmem:[#allocation2 + $0xe4] sm:$0xe]
        %v1890 = vld [vmem:[#allocation2 + $0xe8] sm:$0xf]
        %v1891 = vld [vmem:[#allocation2 + $0xec] sm:$0x1]
        %v1892 = vld [vmem:[#allocation2 + $0xf4] sm:$0xe]
        %v1893 = vld [vmem:[#allocation2 + $0xf8] sm:$0xf]
        %v1894 = vld [vmem:[#allocation2 + $0xfc] sm:$0x1]
        %vm1943 = vcmask 1042432
        %vm1944 = vcmask 1046532
        %vm1945 = vmor %vm1943, %vm1944
        %v1946 = vrot.slane %v1847, 5
        %v1947 = vrot.slane %v1946, 4
        %v1948 = vrot.slane %v1848, 5
        %v1949 = vsel %vm1945, %v1947, %v1948
        %v1950 = vrot.slane %v1948, 4
        %v1951 = vrot.slane %v1849, 5
        %v1952 = vsel %vm1945, %v1950, %v1951
        %v1953 = vrot.slane %v1850, 5
        %v1954 = vrot.slane %v1953, 4
        %v1955 = vrot.slane %v1851, 5
        %v1956 = vsel %vm1945, %v1954, %v1955
        %v1957 = vrot.slane %v1955, 4
        %v1958 = vrot.slane %v1852, 5
        %v1959 = vsel %vm1945, %v1957, %v1958
        %v1960 = vrot.slane %v1853, 5
        %v1961 = vrot.slane %v1960, 4
        %v1962 = vrot.slane %v1854, 5
        %v1963 = vsel %vm1945, %v1961, %v1962
        %v1964 = vrot.slane %v1962, 4
        %v1965 = vrot.slane %v1855, 5
        %v1966 = vsel %vm1945, %v1964, %v1965
        %v1967 = vrot.slane %v1856, 5
        %v1968 = vrot.slane %v1967, 4
        %v1969 = vrot.slane %v1857, 5
        %v1970 = vsel %vm1945, %v1968, %v1969
        %v1971 = vrot.slane %v1969, 4
        %v1972 = vrot.slane %v1858, 5
        %v1973 = vsel %vm1945, %v1971, %v1972
        %v1974 = vrot.slane %v1859, 5
        %v1975 = vrot.slane %v1974, 4
        %v1976 = vrot.slane %v1860, 5
        %v1977 = vsel %vm1945, %v1975, %v1976
        %v1978 = vrot.slane %v1976, 4
        %v1979 = vrot.slane %v1861, 5
        %v1980 = vsel %vm1945, %v1978, %v1979
        %v1981 = vrot.slane %v1862, 5
        %v1982 = vrot.slane %v1981, 4
        %v1983 = vrot.slane %v1863, 5
        %v1984 = vsel %vm1945, %v1982, %v1983
        %v1985 = vrot.slane %v1983, 4
        %v1986 = vrot.slane %v1864, 5
        %v1987 = vsel %vm1945, %v1985, %v1986
        %v1988 = vrot.slane %v1865, 5
        %v1989 = vrot.slane %v1988, 4
        %v1990 = vrot.slane %v1866, 5
        %v1991 = vsel %vm1945, %v1989, %v1990
        %v1992 = vrot.slane %v1990, 4
        %v1993 = vrot.slane %v1867, 5
        %v1994 = vsel %vm1945, %v1992, %v1993
        %v1995 = vrot.slane %v1868, 5
        %v1996 = vrot.slane %v1995, 4
        %v1997 = vrot.slane %v1869, 5
        %v1998 = vsel %vm1945, %v1996, %v1997
        %v1999 = vrot.slane %v1997, 4
        %v2000 = vrot.slane %v1870, 5
        %v2001 = vsel %vm1945, %v1999, %v2000
        %v2002 = vrot.slane %v1871, 5
        %v2003 = vrot.slane %v2002, 4
        %v2004 = vrot.slane %v1872, 5
        %v2005 = vsel %vm1945, %v2003, %v2004
        %v2006 = vrot.slane %v2004, 4
        %v2007 = vrot.slane %v1873, 5
        %v2008 = vsel %vm1945, %v2006, %v2007
        %v2009 = vrot.slane %v1874, 5
        %v2010 = vrot.slane %v2009, 4
        %v2011 = vrot.slane %v1875, 5
        %v2012 = vsel %vm1945, %v2010, %v2011
        %v2013 = vrot.slane %v2011, 4
        %v2014 = vrot.slane %v1876, 5
        %v2015 = vsel %vm1945, %v2013, %v2014
        %v2016 = vrot.slane %v1877, 5
        %v2017 = vrot.slane %v2016, 4
        %v2018 = vrot.slane %v1878, 5
        %v2019 = vsel %vm1945, %v2017, %v2018
        %v2020 = vrot.slane %v2018, 4
        %v2021 = vrot.slane %v1879, 5
        %v2022 = vsel %vm1945, %v2020, %v2021
        %v2023 = vrot.slane %v1880, 5
        %v2024 = vrot.slane %v2023, 4
        %v2025 = vrot.slane %v1881, 5
        %v2026 = vsel %vm1945, %v2024, %v2025
        %v2027 = vrot.slane %v2025, 4
        %v2028 = vrot.slane %v1882, 5
        %v2029 = vsel %vm1945, %v2027, %v2028
        %v2030 = vrot.slane %v1883, 5
        %v2031 = vrot.slane %v2030, 4
        %v2032 = vrot.slane %v1884, 5
        %v2033 = vsel %vm1945, %v2031, %v2032
        %v2034 = vrot.slane %v2032, 4
        %v2035 = vrot.slane %v1885, 5
        %v2036 = vsel %vm1945, %v2034, %v2035
        %v2037 = vrot.slane %v1886, 5
        %v2038 = vrot.slane %v2037, 4
        %v2039 = vrot.slane %v1887, 5
        %v2040 = vsel %vm1945, %v2038, %v2039
        %v2041 = vrot.slane %v2039, 4
        %v2042 = vrot.slane %v1888, 5
        %v2043 = vsel %vm1945, %v2041, %v2042
        %v2044 = vrot.slane %v1889, 5
        %v2045 = vrot.slane %v2044, 4
        %v2046 = vrot.slane %v1890, 5
        %v2047 = vsel %vm1945, %v2045, %v2046
        %v2048 = vrot.slane %v2046, 4
        %v2049 = vrot.slane %v1891, 5
        %v2050 = vsel %vm1945, %v2048, %v2049
        %v2051 = vrot.slane %v1892, 5
        %v2052 = vrot.slane %v2051, 4
        %v2053 = vrot.slane %v1893, 5
        %v2054 = vsel %vm1945, %v2052, %v2053
        %v2055 = vrot.slane %v2053, 4
        %v2056 = vrot.slane %v1894, 5
        %v2057 = vsel %vm1945, %v2055, %v2056
        %v2058 = vunpack.c.l.b16 %v1949
        %v2059 = vunpack.c.l.b16 %v1952
        %v2060 = vunpack.c.l.b16 %v1956
        %v2061 = vunpack.c.l.b16 %v1959
        %v2062 = vunpack.c.l.b16 %v1963
        %v2063 = vunpack.c.l.b16 %v1966
        %v2064 = vunpack.c.l.b16 %v1970
        %v2065 = vunpack.c.l.b16 %v1973
        %v2066 = vunpack.c.l.b16 %v1977
        %v2067 = vunpack.c.l.b16 %v1980
        %v2068 = vunpack.c.l.b16 %v1984
        %v2069 = vunpack.c.l.b16 %v1987
        %v2070 = vunpack.c.l.b16 %v1991
        %v2071 = vunpack.c.l.b16 %v1994
        %v2072 = vunpack.c.l.b16 %v1998
        %v2073 = vunpack.c.l.b16 %v2001
        %v2074 = vunpack.c.l.b16 %v2005
        %v2075 = vunpack.c.l.b16 %v2008
        %v2076 = vunpack.c.l.b16 %v2012
        %v2077 = vunpack.c.l.b16 %v2015
        %v2078 = vunpack.c.l.b16 %v2019
        %v2079 = vunpack.c.l.b16 %v2022
        %v2080 = vunpack.c.l.b16 %v2026
        %v2081 = vunpack.c.l.b16 %v2029
        %v2082 = vunpack.c.l.b16 %v2033
        %v2083 = vunpack.c.l.b16 %v2036
        %v2084 = vunpack.c.l.b16 %v2040
        %v2085 = vunpack.c.l.b16 %v2043
        %v2086 = vunpack.c.l.b16 %v2047
        %v2087 = vunpack.c.l.b16 %v2050
        %v2088 = vunpack.c.l.b16 %v2054
        %v2089 = vunpack.c.l.b16 %v2057
        %v2090 = vpack.c.b16 %v2059, %v2058
        %v2091 = vpack.c.b16 %v2061, %v2060
        %v2092 = vpack.c.b16 %v2063, %v2062
        %v2093 = vpack.c.b16 %v2065, %v2064
        %v2094 = vpack.c.b16 %v2067, %v2066
        %v2095 = vpack.c.b16 %v2069, %v2068
        %v2096 = vpack.c.b16 %v2071, %v2070
        %v2097 = vpack.c.b16 %v2073, %v2072
        %v2098 = vpack.c.b16 %v2075, %v2074
        %v2099 = vpack.c.b16 %v2077, %v2076
        %v2100 = vpack.c.b16 %v2079, %v2078
        %v2101 = vpack.c.b16 %v2081, %v2080
        %v2102 = vpack.c.b16 %v2083, %v2082
        %v2103 = vpack.c.b16 %v2085, %v2084
        %v2104 = vpack.c.b16 %v2087, %v2086
        %v2105 = vpack.c.b16 %v2089, %v2088
        %2106 = vrot.lane.b32.xlu0 %v2090, 16
        %v2107 = vpop.permute.xlu0 %2106
        %2108 = vrot.lane.b32.xlu0 %v2091, 16
        %v2109 = vpop.permute.xlu0 %2108
        %2110 = vrot.lane.b32.xlu0 %v2092, 16
        %v2111 = vpop.permute.xlu0 %2110
        %2112 = vrot.lane.b32.xlu0 %v2093, 16
        %v2113 = vpop.permute.xlu0 %2112
        %2114 = vrot.lane.b32.xlu0 %v2094, 16
        %v2115 = vpop.permute.xlu0 %2114
        %2116 = vrot.lane.b32.xlu0 %v2095, 16
        %v2117 = vpop.permute.xlu0 %2116
        %2118 = vrot.lane.b32.xlu0 %v2096, 16
        %v2119 = vpop.permute.xlu0 %2118
        %2120 = vrot.lane.b32.xlu0 %v2097, 16
        %v2121 = vpop.permute.xlu0 %2120
        %2122 = vrot.lane.b32.xlu0 %v2098, 16
        %v2123 = vpop.permute.xlu0 %2122
        %2124 = vrot.lane.b32.xlu0 %v2099, 16
        %v2125 = vpop.permute.xlu0 %2124
        %2126 = vrot.lane.b32.xlu0 %v2100, 16
        %v2127 = vpop.permute.xlu0 %2126
        %2128 = vrot.lane.b32.xlu0 %v2101, 16
        %v2129 = vpop.permute.xlu0 %2128
        %2130 = vrot.lane.b32.xlu0 %v2102, 16
        %v2131 = vpop.permute.xlu0 %2130
        %2132 = vrot.lane.b32.xlu0 %v2103, 16
        %v2133 = vpop.permute.xlu0 %2132
        %2134 = vrot.lane.b32.xlu0 %v2104, 16
        %v2135 = vpop.permute.xlu0 %2134
        %2136 = vrot.lane.b32.xlu0 %v2105, 16
        %v2137 = vpop.permute.xlu0 %2136
        %vm2154 = vcmask 162944
        %2155 = vst.msk [vmem:[#allocation3] sm:$0xff] %vm2154, %v2107
        %2156 = vst.msk [vmem:[#allocation3 + $0x8] sm:$0xff] %vm2154, %v2109
        %2157 = vst.msk [vmem:[#allocation3 + $0x10] sm:$0xff] %vm2154, %v2111
        %2158 = vst.msk [vmem:[#allocation3 + $0x18] sm:$0xff] %vm2154, %v2113
        %2159 = vst.msk [vmem:[#allocation3 + $0x20] sm:$0xff] %vm2154, %v2115
        %2160 = vst.msk [vmem:[#allocation3 + $0x28] sm:$0xff] %vm2154, %v2117
        %2161 = vst.msk [vmem:[#allocation3 + $0x30] sm:$0xff] %vm2154, %v2119
        %2162 = vst.msk [vmem:[#allocation3 + $0x38] sm:$0xff] %vm2154, %v2121
        %2163 = vst.msk [vmem:[#allocation3 + $0x40] sm:$0xff] %vm2154, %v2123
        %2164 = vst.msk [vmem:[#allocation3 + $0x48] sm:$0xff] %vm2154, %v2125
        %2165 = vst.msk [vmem:[#allocation3 + $0x50] sm:$0xff] %vm2154, %v2127
        %2166 = vst.msk [vmem:[#allocation3 + $0x58] sm:$0xff] %vm2154, %v2129
        %2167 = vst.msk [vmem:[#allocation3 + $0x60] sm:$0xff] %vm2154, %v2131
        %2168 = vst.msk [vmem:[#allocation3 + $0x68] sm:$0xff] %vm2154, %v2133
        %2169 = vst.msk [vmem:[#allocation3 + $0x70] sm:$0xff] %vm2154, %v2135
        %2170 = vst.msk [vmem:[#allocation3 + $0x78] sm:$0xff] %vm2154, %v2137
        %v2171 = vld [vmem:[#allocation3] sm:$0xff]
        %v2172 = vld [vmem:[#allocation3 + $0x8] sm:$0xff]
        %v2173 = vld [vmem:[#allocation3 + $0x10] sm:$0xff]
        %v2174 = vld [vmem:[#allocation3 + $0x18] sm:$0xff]
        %v2175 = vld [vmem:[#allocation3 + $0x20] sm:$0xff]
        %v2176 = vld [vmem:[#allocation3 + $0x28] sm:$0xff]
        %v2177 = vld [vmem:[#allocation3 + $0x30] sm:$0xff]
        %v2178 = vld [vmem:[#allocation3 + $0x38] sm:$0xff]
        %v2179 = vld [vmem:[#allocation3 + $0x40] sm:$0xff]
        %v2180 = vld [vmem:[#allocation3 + $0x48] sm:$0xff]
        %v2181 = vld [vmem:[#allocation3 + $0x50] sm:$0xff]
        %v2182 = vld [vmem:[#allocation3 + $0x58] sm:$0xff]
        %v2183 = vld [vmem:[#allocation3 + $0x60] sm:$0xff]
        %v2184 = vld [vmem:[#allocation3 + $0x68] sm:$0xff]
        %v2185 = vld [vmem:[#allocation3 + $0x70] sm:$0xff]
        %v2186 = vld [vmem:[#allocation3 + $0x78] sm:$0xff]
        %v2187 = vld [vmem:[%s210] sm:$0xf]
        %v2188 = vld [vmem:[%s210 + $0x4] sm:$0xf]
        %v2189 = vld [vmem:[%s210 + $0x8] sm:$0x3]
        %v2191 = vlaneseq
        %v2192 = vshrl.u32 %v2191, 7
        %v2193 = vsub.s32 0, %v2192
        %v2194 = vrot.slane %v313, %v2193
        %v2199 = vunpack.c.l.b16 %v2187
        %v2200 = vunpack.c.l.b16 %v2188
        %v2201 = vunpack.c.l.b16 %v2189
        %v2202 = vpack.c.b16 %v2200, %v2199
        %v2203 = vpack.c.b16 %v2201, %v2201
        %vm2205 = vcmask 162816
        %v2207 = vsel %vm2205, %v2171, 0
        %v2210 = vsel %vm2205, %v2172, 0
        %v2213 = vsel %vm2205, %v2173, 0
        %v2216 = vsel %vm2205, %v2174, 0
        %v2219 = vsel %vm2205, %v2175, 0
        %v2222 = vsel %vm2205, %v2176, 0
        %v2225 = vsel %vm2205, %v2177, 0
        %v2228 = vsel %vm2205, %v2178, 0
        %v2231 = vsel %vm2205, %v2179, 0
        %v2234 = vsel %vm2205, %v2180, 0
        %v2237 = vsel %vm2205, %v2181, 0
        %v2240 = vsel %vm2205, %v2182, 0
        %v2243 = vsel %vm2205, %v2183, 0
        %v2246 = vsel %vm2205, %v2184, 0
        %v2249 = vsel %vm2205, %v2185, 0
        %v2252 = vsel %vm2205, %v2186, 0
        %vm2254 = vcmask 1041408
        %v2256 = vsel %vm2254, %v2203, 0
        %2258 = vmatprep.subr.bf16.mxu0 0
        %2259 = vmatpush1.bf16.msra.mxu0 %v2202
        %2260 = vmatprep.subr.bf16.mxu0 0
        %2261 = vmatpush1.bf16.msra.mxu0 %v2256
        %2262 = vmatprep.subr.bf16.mxu0 0
        %2263 = vmatpush1.bf16.msra.mxu0 0
        %2264 = vmatprep.subr.bf16.mxu0 0
        %2265 = vmatpush1.bf16.msra.mxu0 0
        %2266 = vmatprep.subr.bf16.mxu0 0
        %2267 = vmatpush1.bf16.msra.mxu0 0
        %2268 = vmatprep.subr.bf16.mxu0 0
        %2269 = vmatpush1.bf16.msra.mxu0 0
        %2270 = vmatprep.subr.bf16.mxu0 0
        %2271 = vmatpush1.bf16.msra.mxu0 0
        %2272 = vmatprep.subr.bf16.mxu0 0
        %2273 = vmatpush1.bf16.msra.mxu0 0
        %2274 = vmatprep.subr.bf16.mxu0 0
        %2275 = vmatpush1.bf16.msra.mxu0 0
        %2276 = vmatprep.subr.bf16.mxu0 0
        %2277 = vmatpush1.bf16.msra.mxu0 0
        %2278 = vmatprep.subr.bf16.mxu0 0
        %2279 = vmatpush1.bf16.msra.mxu0 0
        %2280 = vmatprep.subr.bf16.mxu0 0
        %2281 = vmatpush1.bf16.msra.mxu0 0
        %2282 = vmatprep.subr.bf16.mxu0 0
        %2283 = vmatpush1.bf16.msra.mxu0 0
        %2284 = vmatprep.subr.bf16.mxu0 0
        %2285 = vmatpush1.bf16.msra.mxu0 0
        %2286 = vmatprep.subr.bf16.mxu0 0
        %2287 = vmatpush1.bf16.msra.mxu0 0
        %2288 = vmatprep.subr.bf16.mxu0 0
        %2289 = vmatpush1.bf16.msra.mxu0 0
        %2290 = vmatprep.mubr.bf16.mxu0 0
        %2291 = vmatmul.mubr.bf16.gmra.mrb[0].mxu0 %v2207
        %v2292 = vpop.f32.mrb[0].mxu0
        %v2293 = vadd.f32 %v2194, %v2292
        %v2294 = vpop.f32.mrb[0].mxu0
        %v2295 = vpop.f32.mrb[0].mxu0
        %v2296 = vadd.f32 %v2194, %v2295
        %v2297 = vpop.f32.mrb[0].mxu0
        %2298 = vmatprep.mubr.bf16.mxu0 0
        %2299 = vmatmul.mubr.bf16.gmra.mrb[0].mxu0 %v2210
        %v2300 = vpop.f32.mrb[0].mxu0
        %v2301 = vadd.f32 %v2194, %v2300
        %v2302 = vpop.f32.mrb[0].mxu0
        %v2303 = vpop.f32.mrb[0].mxu0
        %v2304 = vadd.f32 %v2194, %v2303
        %v2305 = vpop.f32.mrb[0].mxu0
        %2306 = vmatprep.mubr.bf16.mxu0 0
        %2307 = vmatmul.mubr.bf16.gmra.mrb[0].mxu0 %v2213
        %v2308 = vpop.f32.mrb[0].mxu0
        %v2309 = vadd.f32 %v2194, %v2308
        %v2310 = vpop.f32.mrb[0].mxu0
        %v2311 = vpop.f32.mrb[0].mxu0
        %v2312 = vadd.f32 %v2194, %v2311
        %v2313 = vpop.f32.mrb[0].mxu0
        %2314 = vmatprep.mubr.bf16.mxu0 0
        %2315 = vmatmul.mubr.bf16.gmra.mrb[0].mxu0 %v2216
        %v2316 = vpop.f32.mrb[0].mxu0
        %v2317 = vadd.f32 %v2194, %v2316
        %v2318 = vpop.f32.mrb[0].mxu0
        %v2319 = vpop.f32.mrb[0].mxu0
        %v2320 = vadd.f32 %v2194, %v2319
        %v2321 = vpop.f32.mrb[0].mxu0
        %2322 = vmatprep.mubr.bf16.mxu0 0
        %2323 = vmatmul.mubr.bf16.gmra.mrb[0].mxu0 %v2219
        %v2324 = vpop.f32.mrb[0].mxu0
        %v2325 = vadd.f32 %v2194, %v2324
        %v2326 = vpop.f32.mrb[0].mxu0
        %v2327 = vpop.f32.mrb[0].mxu0
        %v2328 = vadd.f32 %v2194, %v2327
        %v2329 = vpop.f32.mrb[0].mxu0
        %2330 = vmatprep.mubr.bf16.mxu0 0
        %2331 = vmatmul.mubr.bf16.gmra.mrb[0].mxu0 %v2222
        %v2332 = vpop.f32.mrb[0].mxu0
        %v2333 = vadd.f32 %v2194, %v2332
        %v2334 = vpop.f32.mrb[0].mxu0
        %v2335 = vpop.f32.mrb[0].mxu0
        %v2336 = vadd.f32 %v2194, %v2335
        %v2337 = vpop.f32.mrb[0].mxu0
        %2338 = vmatprep.mubr.bf16.mxu0 0
        %2339 = vmatmul.mubr.bf16.gmra.mrb[0].mxu0 %v2225
        %v2340 = vpop.f32.mrb[0].mxu0
        %v2341 = vadd.f32 %v2194, %v2340
        %v2342 = vpop.f32.mrb[0].mxu0
        %v2343 = vpop.f32.mrb[0].mxu0
        %v2344 = vadd.f32 %v2194, %v2343
        %v2345 = vpop.f32.mrb[0].mxu0
        %2346 = vmatprep.mubr.bf16.mxu0 0
        %2347 = vmatmul.mubr.bf16.gmra.mrb[0].mxu0 %v2228
        %v2348 = vpop.f32.mrb[0].mxu0
        %v2349 = vadd.f32 %v2194, %v2348
        %v2350 = vpop.f32.mrb[0].mxu0
        %v2351 = vpop.f32.mrb[0].mxu0
        %v2352 = vadd.f32 %v2194, %v2351
        %v2353 = vpop.f32.mrb[0].mxu0
        %2354 = vmatprep.mubr.bf16.mxu0 0
        %2355 = vmatmul.mubr.bf16.gmra.mrb[0].mxu0 %v2231
        %v2356 = vpop.f32.mrb[0].mxu0
        %v2357 = vadd.f32 %v2194, %v2356
        %v2358 = vpop.f32.mrb[0].mxu0
        %v2359 = vpop.f32.mrb[0].mxu0
        %v2360 = vadd.f32 %v2194, %v2359
        %v2361 = vpop.f32.mrb[0].mxu0
        %2362 = vmatprep.mubr.bf16.mxu0 0
        %2363 = vmatmul.mubr.bf16.gmra.mrb[0].mxu0 %v2234
        %v2364 = vpop.f32.mrb[0].mxu0
        %v2365 = vadd.f32 %v2194, %v2364
        %v2366 = vpop.f32.mrb[0].mxu0
        %v2367 = vpop.f32.mrb[0].mxu0
        %v2368 = vadd.f32 %v2194, %v2367
        %v2369 = vpop.f32.mrb[0].mxu0
        %2370 = vmatprep.mubr.bf16.mxu0 0
        %2371 = vmatmul.mubr.bf16.gmra.mrb[0].mxu0 %v2237
        %v2372 = vpop.f32.mrb[0].mxu0
        %v2373 = vadd.f32 %v2194, %v2372
        %v2374 = vpop.f32.mrb[0].mxu0
        %v2375 = vpop.f32.mrb[0].mxu0
        %v2376 = vadd.f32 %v2194, %v2375
        %v2377 = vpop.f32.mrb[0].mxu0
        %2378 = vmatprep.mubr.bf16.mxu0 0
        %2379 = vmatmul.mubr.bf16.gmra.mrb[0].mxu0 %v2240
        %v2380 = vpop.f32.mrb[0].mxu0
        %v2381 = vadd.f32 %v2194, %v2380
        %v2382 = vpop.f32.mrb[0].mxu0
        %v2383 = vpop.f32.mrb[0].mxu0
        %v2384 = vadd.f32 %v2194, %v2383
        %v2385 = vpop.f32.mrb[0].mxu0
        %2386 = vmatprep.mubr.bf16.mxu0 0
        %2387 = vmatmul.mubr.bf16.gmra.mrb[0].mxu0 %v2243
        %v2388 = vpop.f32.mrb[0].mxu0
        %v2389 = vadd.f32 %v2194, %v2388
        %v2390 = vpop.f32.mrb[0].mxu0
        %v2391 = vpop.f32.mrb[0].mxu0
        %v2392 = vadd.f32 %v2194, %v2391
        %v2393 = vpop.f32.mrb[0].mxu0
        %2394 = vmatprep.mubr.bf16.mxu0 0
        %2395 = vmatmul.mubr.bf16.gmra.mrb[0].mxu0 %v2246
        %v2396 = vpop.f32.mrb[0].mxu0
        %v2397 = vadd.f32 %v2194, %v2396
        %v2398 = vpop.f32.mrb[0].mxu0
        %v2399 = vpop.f32.mrb[0].mxu0
        %v2400 = vadd.f32 %v2194, %v2399
        %v2401 = vpop.f32.mrb[0].mxu0
        %2402 = vmatprep.mubr.bf16.mxu0 0
        %2403 = vmatmul.mubr.bf16.gmra.mrb[0].mxu0 %v2249
        %v2404 = vpop.f32.mrb[0].mxu0
        %v2405 = vadd.f32 %v2194, %v2404
        %v2406 = vpop.f32.mrb[0].mxu0
        %v2407 = vpop.f32.mrb[0].mxu0
        %v2408 = vadd.f32 %v2194, %v2407
        %v2409 = vpop.f32.mrb[0].mxu0
        %2410 = vmatprep.mubr.bf16.mxu0 0
        %2411 = vmatmul.mubr.bf16.gmra.mrb[0].mxu0 %v2252
        %v2412 = vpop.f32.mrb[0].mxu0
        %v2413 = vadd.f32 %v2194, %v2412
        %v2414 = vpop.f32.mrb[0].mxu0
        %v2415 = vpop.f32.mrb[0].mxu0
        %v2416 = vadd.f32 %v2194, %v2415
        %v2417 = vpop.f32.mrb[0].mxu0
        %2418 = vdwg.mxu0
        %2419 = vst [vmem:[%s201] sm:$0xff] %v2293
        %2420 = vst [vmem:[%s201 + $0x8] sm:$0xff] %v2296
        %2421 = vst [vmem:[%s201 + $0x10] sm:$0xff] %v2301
        %2422 = vst [vmem:[%s201 + $0x18] sm:$0xff] %v2304
        %2423 = vst [vmem:[%s201 + $0x20] sm:$0xff] %v2309
        %2424 = vst [vmem:[%s201 + $0x28] sm:$0xff] %v2312
        %2425 = vst [vmem:[%s201 + $0x30] sm:$0xff] %v2317
        %2426 = vst [vmem:[%s201 + $0x38] sm:$0xff] %v2320
        %2427 = vst [vmem:[%s201 + $0x40] sm:$0xff] %v2325
        %2428 = vst [vmem:[%s201 + $0x48] sm:$0xff] %v2328
        %2429 = vst [vmem:[%s201 + $0x50] sm:$0xff] %v2333
        %2430 = vst [vmem:[%s201 + $0x58] sm:$0xff] %v2336
        %2431 = vst [vmem:[%s201 + $0x60] sm:$0xff] %v2341
        %2432 = vst [vmem:[%s201 + $0x68] sm:$0xff] %v2344
        %2433 = vst [vmem:[%s201 + $0x70] sm:$0xff] %v2349
        %2434 = vst [vmem:[%s201 + $0x78] sm:$0xff] %v2352
        %2435 = vst [vmem:[%s201 + $0x80] sm:$0xff] %v2357
        %2436 = vst [vmem:[%s201 + $0x88] sm:$0xff] %v2360
        %2437 = vst [vmem:[%s201 + $0x90] sm:$0xff] %v2365
        %2438 = vst [vmem:[%s201 + $0x98] sm:$0xff] %v2368
        %2439 = vst [vmem:[%s201 + $0xa0] sm:$0xff] %v2373
        %2440 = vst [vmem:[%s201 + $0xa8] sm:$0xff] %v2376
        %2441 = vst [vmem:[%s201 + $0xb0] sm:$0xff] %v2381
        %2442 = vst [vmem:[%s201 + $0xb8] sm:$0xff] %v2384
        %2443 = vst [vmem:[%s201 + $0xc0] sm:$0xff] %v2389
        %2444 = vst [vmem:[%s201 + $0xc8] sm:$0xff] %v2392
        %2445 = vst [vmem:[%s201 + $0xd0] sm:$0xff] %v2397
        %2446 = vst [vmem:[%s201 + $0xd8] sm:$0xff] %v2400
        %2447 = vst [vmem:[%s201 + $0xe0] sm:$0xff] %v2405
        %2448 = vst [vmem:[%s201 + $0xe8] sm:$0xff] %v2408
        %2449 = vst [vmem:[%s201 + $0xf0] sm:$0xff] %v2413
        %2450 = vst [vmem:[%s201 + $0xf8] sm:$0xff] %v2416
        %s2451 = sand.u32 %s117, 1
        %s2452 = scalar_lea.sflag [#allocation5], %s2451
        %s2453 = sand.u32 %s117, 1
        %s2454 = smul.addr %s2453, 256
        %s2455 = scalar_lea.vmem [#allocation4], %s2454
        // Predicated region
        $region33: #{tpu_custom_call.1} parent=31 // pred_check
          %p2456 = pneg %p127
        $region34: #{tpu_custom_call.1} parent=31 // pred_check_branch
          %2458 = sbr.rel (%p2456) target = $region36
        $region35: #{tpu_custom_call.1} parent=31 // pred_region
          %s2460 = ssub.s32 4096, 4096
          %2461 = vsyncadd %s2452, %s2460
          %s2462 = smul.addr %s21, 32
          %s2463 = sadd.s32 %s22, %s2462
          %s2464 = smul.addr %s2463, 128
          %s2465 = scalar_lea.hbm %s3, %s2464
          %s2466 = sshll.u32 %s2455, 4
          %s2467 = int_to_ptr.vmem [resolvable:$true] %s2466
          %2472 = dma.vmem_to_hbm [thread:$0]  %s2467, 4096, %s2465, %s2452, 128, 128, 8
        $region36: #{tpu_custom_call.1} parent=31 // pred_fallthru
          _
      $region32: #{tpu_custom_call.1} parent=5 // pred_fallthru
        _
      %p2473 = scmp.le.s32.totalorder 2, %s12
      // Predicated region
      $region37: #{tpu_custom_call.1} parent=5 // pred_check
        %p2474 = pneg %p2473
      $region38: #{tpu_custom_call.1} parent=5 // pred_check_branch
        %2476 = sbr.rel (%p2474) target = $region40
      $region39: #{tpu_custom_call.1} parent=5 // pred_region
        %s2477 = ssub.s32 %s12, 2
        // Predicated region
        $region41: #{tpu_custom_call.1} parent=39 // pred_check
          %p2478 = pneg %p133
        $region42: #{tpu_custom_call.1} parent=39 // pred_check_branch
          %2480 = sbr.rel (%p2478) target = $region44
        $region43: #{tpu_custom_call.1} parent=39 // pred_region
          %s2481 = sand.u32 %s118, 1
          %s2482 = scalar_lea.sflag [#allocation5], %s2481
          %s2483 = sand.u32 %s118, 1
          %s2484 = smul.addr %s2483, 256
          %s2485 = scalar_lea.vmem [#allocation4], %s2484
          %2486 = dma.done %s2482, 4096
        $region44: #{tpu_custom_call.1} parent=39 // pred_fallthru
          _
      $region40: #{tpu_custom_call.1} parent=5 // pred_fallthru
        _
    $region6: #{tpu_custom_call.1} parent=1 // loop_footer
      %s16 = sadd.s32 1, %s12
    $region7: #{tpu_custom_call.1} parent=1 // loop_footer_branch
      %11 = sbr.rel target = $region3
    $region8: #{tpu_custom_call.1} parent=1 // loop_exit
      _
    %2487 = vsyncpa [#allocation5], 1
    %s2488 = scalar_lea.sflag [#allocation5], 1
    %2489 = vsyncpa %s2488, 1

</llo_original>
